<compile_context>
chip_gen: v5e
topology: v5e:2x2
jax: 0.10.0
libtpu: 0.0.40
codegen_flags: <defaults>
</compile_context>

<pallas_src>
import functools

import jax
import jax.numpy as jnp
from jax.experimental import pallas as pl
from jax.experimental.pallas import tpu as pltpu


_LANE = 128
_VMEM_LIMIT_BYTES = 32 * 1024 * 1024  # safe on v5e/v6e (128 MiB) and v7x (64 MiB)


def _round_up(x, m):
    return (x + m - 1) // m * m


def _pick_tile(n_pad, target):
    """Largest tile <= target (power-of-two multiple of 128) dividing n_pad."""
    t = min(target, n_pad)
    while n_pad % t:
        t //= 2
    return t


# ---------------------------------------------------------------------------
# Kernel 1: feature transform  XW = (X @ W) * d_out^{-1/2}   (row tiled)
# ---------------------------------------------------------------------------
def transform_kernel(x_ref, w_ref, dout_ref, o_ref):
    xw = jnp.dot(x_ref[...], w_ref[...], preferred_element_type=jnp.float32)
    o_ref[...] = (xw * dout_ref[...]).astype(o_ref.dtype)


def feature_transform(x, w, dout_invsqrt, *, tm):
    n_pad, f = x.shape
    h_pad = w.shape[1]
    return pl.pallas_call(
        transform_kernel,
        out_shape=jax.ShapeDtypeStruct((n_pad, h_pad), jnp.bfloat16),
        grid=(n_pad // tm,),
        in_specs=[
            pl.BlockSpec((tm, f), lambda i: (i, 0)),        # X row tile
            pl.BlockSpec((f, h_pad), lambda i: (0, 0)),     # W (revisited block)
            pl.BlockSpec((tm, 1), lambda i: (i, 0)),        # d_out^{-1/2}
        ],
        out_specs=pl.BlockSpec((tm, h_pad), lambda i: (i, 0)),
        compiler_params=pltpu.CompilerParams(
            dimension_semantics=("parallel",),
            vmem_limit_bytes=_VMEM_LIMIT_BYTES,
        ),
    )(x, w, dout_invsqrt)


# ---------------------------------------------------------------------------
# Kernel 2: tiled aggregation  out = d_in^{-1/2} * (A @ XW) + b  (+ ReLU)
#   grid = (row tiles, K tiles), f32 VMEM accumulator, epilogue on last K.
# ---------------------------------------------------------------------------
def aggregate_kernel(a_ref, xw_ref, din_ref, b_ref, o_ref, acc_ref, *,
                     apply_relu):
    k = pl.program_id(1)

    @pl.when(k == 0)
    def _():
        acc_ref[...] = jnp.zeros_like(acc_ref)

    acc_ref[...] += jnp.dot(a_ref[...], xw_ref[...],
                            preferred_element_type=jnp.float32)

    @pl.when(k == pl.num_programs(1) - 1)
    def _():
        out = acc_ref[...] * din_ref[...] + b_ref[...]
        if apply_relu:
            out = jnp.maximum(out, 0.0)
        o_ref[...] = out.astype(o_ref.dtype)


def aggregate(a_bf16, xw, din_invsqrt, bias, *, apply_relu, out_dtype, tm, tk):
    n_pad = a_bf16.shape[0]
    h_pad = xw.shape[1]
    kernel = functools.partial(aggregate_kernel, apply_relu=apply_relu)
    return pl.pallas_call(
        kernel,
        out_shape=jax.ShapeDtypeStruct((n_pad, h_pad), out_dtype),
        grid=(n_pad // tm, n_pad // tk),
        in_specs=[
            pl.BlockSpec((tm, tk), lambda i, k: (i, k)),        # A tile
            pl.BlockSpec((tk, h_pad), lambda i, k: (k, 0)),     # XW tile
            pl.BlockSpec((tm, 1), lambda i, k: (i, 0)),         # d_in^{-1/2}
            pl.BlockSpec((1, h_pad), lambda i, k: (0, 0)),      # bias
        ],
        out_specs=pl.BlockSpec((tm, h_pad), lambda i, k: (i, 0)),
        scratch_shapes=[pltpu.VMEM((tm, h_pad), jnp.float32)],
        compiler_params=pltpu.CompilerParams(
            dimension_semantics=("parallel", "arbitrary"),
            vmem_limit_bytes=_VMEM_LIMIT_BYTES,
        ),
    )(a_bf16, xw, din_invsqrt, bias)


def graph_conv_layer(a_bf16, h, w_pad, b_pad, din_invsqrt, dout_invsqrt, *,
                     apply_relu, out_dtype, tm, tk):
    """One GraphConv layer: transform (+ d_out scale) then tiled aggregation."""
    xw = feature_transform(h.astype(jnp.bfloat16), w_pad.astype(jnp.bfloat16),
                           dout_invsqrt, tm=tm)
    return aggregate(a_bf16, xw, din_invsqrt, b_pad, apply_relu=apply_relu,
                     out_dtype=out_dtype, tm=tm, tk=tk)


# ---------------------------------------------------------------------------
# GNNConv forward (plain-JAX glue: degrees, padding, parameter prep)
# ---------------------------------------------------------------------------
def gnn_conv_forward(adj, features, params, *, block_m=512, block_k=512):
    """adj[dst, src] = 1.0 if edge src -> dst, else 0.0."""
    adj = adj.astype(jnp.float32)
    n = adj.shape[0]
    hidden = params["w1"].shape[1]

    n_pad = _round_up(n, max(block_m, block_k, _LANE))
    h_pad = _round_up(max(hidden, 1), _LANE)
    out_pad = _LANE                       # layer-2 output lane-padded to 128
    tm = _pick_tile(n_pad, block_m)
    tk = _pick_tile(n_pad, block_k)

    # DGL GraphConv norm='both': clamp degrees to >= 1 (allow_zero_in_degree).
    deg_in = jnp.clip(adj.sum(axis=1), 1.0, None)    # incoming degree per dst
    deg_out = jnp.clip(adj.sum(axis=0), 1.0, None)   # outgoing degree per src
    din_invsqrt = jnp.pad(deg_in ** -0.5, (0, n_pad - n),
                          constant_values=1.0).reshape(n_pad, 1)
    dout_invsqrt = jnp.pad(deg_out ** -0.5, (0, n_pad - n),
                           constant_values=1.0).reshape(n_pad, 1)

    # Raw 0/1 adjacency in bf16 (exact); normalization is folded into kernels.
    a_bf16 = jnp.pad(adj, ((0, n_pad - n), (0, n_pad - n))).astype(jnp.bfloat16)
    x_pad = jnp.pad(features.astype(jnp.float32), ((0, n_pad - n), (0, 0)))

    # Zero-pad weights/biases to lane-dense widths (sliced off at the end).
    w1 = jnp.pad(params["w1"], ((0, 0), (0, h_pad - hidden)))
    b1 = jnp.pad(params["b1"].reshape(1, -1), ((0, 0), (0, h_pad - hidden)))
    w2 = jnp.pad(params["w2"], ((0, h_pad - hidden), (0, out_pad - 1)))
    b2 = jnp.pad(params["b2"].reshape(1, -1), ((0, 0), (0, out_pad - 1)))

    # Layer 1: GraphConv + ReLU
    h1 = graph_conv_layer(a_bf16, x_pad, w1, b1, din_invsqrt, dout_invsqrt,
                          apply_relu=True, out_dtype=jnp.bfloat16, tm=tm, tk=tk)
    # TODO(synk): nn.Dropout is identity in eval mode; training-mode dropout
    # (random mask + 1/(1-p) scaling) is omitted here.

    # Layer 2: GraphConv -> 1 logit (computed lane-padded to 128, slice col 0)
    out = graph_conv_layer(a_bf16, h1, w2, b2, din_invsqrt, dout_invsqrt,
                           apply_relu=False, out_dtype=jnp.float32,
                           tm=tm, tk=tk)
    return out[:n, :1]


def init_params(key, in_feat, hidden_size):
    """Deterministic (xavier-uniform-style) parameter init."""
    k1, k2 = jax.random.split(key)

    def xavier(k, fan_in, fan_out):
        limit = (6.0 / (fan_in + fan_out)) ** 0.5
        return jax.random.uniform(k, (fan_in, fan_out), jnp.float32,
                                  -limit, limit)

    return {
        "w1": xavier(k1, in_feat, hidden_size),
        "b1": jnp.zeros((1, hidden_size), jnp.float32),
        "w2": xavier(k2, hidden_size, 1),
        "b2": jnp.zeros((1, 1), jnp.float32),
    }


if __name__ == "__main__":
    # Small deterministic example: 256 nodes, 16 input features, hidden=32.
    # block_m/block_k=128 -> grid (2, 2): exercises accumulator + parallel rows.
    N, IN_FEAT, HIDDEN = 256, 16, 32

    key = jax.random.PRNGKey(0)
    k_adj, k_feat, k_param = jax.random.split(key, 3)

    # Random sparse adjacency with no self loops.
    adj = (jax.random.uniform(k_adj, (N, N)) < 0.05).astype(jnp.float32)
    adj = adj * (1.0 - jnp.eye(N, dtype=jnp.float32))

    features = jax.random.normal(k_feat, (N, IN_FEAT), jnp.float32)
    params = init_params(k_param, IN_FEAT, HIDDEN)

    fwd = jax.jit(functools.partial(gnn_conv_forward, block_m=128, block_k=128))
    out = jax.block_until_ready(fwd(adj, features, params))
    assert out.shape == (N, 1)

    # Plain-JAX fp32 reference (loose tolerance: bf16 operands in the kernels).
    def reference(adj, x, p):
        di = jnp.clip(adj.sum(axis=1), 1.0, None)
        do = jnp.clip(adj.sum(axis=0), 1.0, None)
        a_hat = adj * (di ** -0.5)[:, None] * (do ** -0.5)[None, :]
        h = jnp.maximum(a_hat @ (x @ p["w1"]) + p["b1"], 0.0)
        return a_hat @ (h @ p["w2"]) + p["b2"]

    ref = reference(adj, features, params)
    max_err = float(jnp.max(jnp.abs(out - ref)))
    assert max_err < 5e-2, f"max abs err {max_err}"

    print("KERNEL_OK")
</pallas_src>

<mosaic_0001>
module attributes {stable_mosaic.version = 11 : i64} {
  func.func @transform_kernel(%arg0: i32, %arg1: memref<128x16xbf16, #tpu.memory_space<vmem>>, %arg2: memref<16x128xbf16, #tpu.memory_space<vmem>>, %arg3: memref<128x1xf32, #tpu.memory_space<vmem>>, %arg4: memref<128x128xbf16, #tpu.memory_space<vmem>>) attributes {dimension_semantics = [#tpu.dimension_semantics<parallel>], iteration_bounds = array<i64: 2>, scalar_prefetch = 0 : i64, scratch_operands = 0 : i64, tpu.core_type = #tpu.core_type<tc>, window_params = [{transform_indices = @transform_0, window_bounds = array<i64: 128, 16>}, {pipeline_mode = #tpu.pipeline_mode<synchronous>, transform_indices = @transform_1, window_bounds = array<i64: 16, 128>}, {transform_indices = @transform_2, window_bounds = array<i64: 128, 1>}, {transform_indices = @transform_3, window_bounds = array<i64: 128, 128>}]} {
    %c0 = arith.constant 0 : index
    %c0_0 = arith.constant 0 : index
    %0 = vector.load %arg1[%c0, %c0_0] : memref<128x16xbf16, #tpu.memory_space<vmem>>, vector<128x16xbf16>
    %c0_1 = arith.constant 0 : index
    %c0_2 = arith.constant 0 : index
    %1 = vector.load %arg2[%c0_1, %c0_2] : memref<16x128xbf16, #tpu.memory_space<vmem>>, vector<16x128xbf16>
    %cst = arith.constant dense<0.000000e+00> : vector<128x128xf32>
    %2 = tpu.matmul %0, %1, %cst {dimension_numbers = #tpu.dot_dimension_numbers<[1], [0], [0], [1], [0, 0, 1, 1], [], []>} : vector<128x16xbf16>, vector<16x128xbf16>, vector<128x128xf32> -> vector<128x128xf32>
    %c0_3 = arith.constant 0 : index
    %c0_4 = arith.constant 0 : index
    %3 = vector.load %arg3[%c0_3, %c0_4] : memref<128x1xf32, #tpu.memory_space<vmem>>, vector<128x1xf32>
    %4 = vector.broadcast %3 : vector<128x1xf32> to vector<128x128xf32>
    %5 = arith.mulf %2, %4 : vector<128x128xf32>
    %6 = arith.truncf %5 : vector<128x128xf32> to vector<128x128xbf16>
    %c0_5 = arith.constant 0 : index
    %c0_6 = arith.constant 0 : index
    %7 = vector.load %arg4[%c0_5, %c0_6] : memref<128x128xbf16, #tpu.memory_space<vmem>>, vector<128x128xbf16>
    tpu.vector_store %arg4[%c0_5, %c0_6], %6 {strides = array<i32>} : memref<128x128xbf16, #tpu.memory_space<vmem>>, vector<128x128xbf16>,
    return
  }
  func.func @transform_0(%arg0: i32) -> (i32, i32) {
    %c0_i32 = arith.constant 0 : i32
    %c0_i32_0 = arith.constant 0 : i32
    return %arg0, %c0_i32 : i32, i32
  }
  func.func @transform_1(%arg0: i32) -> (i32, i32) {
    %c0_i32 = arith.constant 0 : i32
    %c0_i32_0 = arith.constant 0 : i32
    %c0_i32_1 = arith.constant 0 : i32
    return %c0_i32, %c0_i32_0 : i32, i32
  }
  func.func @transform_2(%arg0: i32) -> (i32, i32) {
    %c0_i32 = arith.constant 0 : i32
    %c0_i32_0 = arith.constant 0 : i32
    return %arg0, %c0_i32 : i32, i32
  }
  func.func @transform_3(%arg0: i32) -> (i32, i32) {
    %c0_i32 = arith.constant 0 : i32
    %c0_i32_0 = arith.constant 0 : i32
    return %arg0, %c0_i32 : i32, i32
  }
}

module attributes {stable_mosaic.version = 11 : i64} {
  func.func @aggregate_kernel(%arg0: i32, %arg1: i32, %arg2: memref<128x128xbf16, #tpu.memory_space<vmem>>, %arg3: memref<128x128xbf16, #tpu.memory_space<vmem>>, %arg4: memref<128x1xf32, #tpu.memory_space<vmem>>, %arg5: memref<1x128xf32, #tpu.memory_space<vmem>>, %arg6: memref<128x128xbf16, #tpu.memory_space<vmem>>, %arg7: memref<128x128xf32, #tpu.memory_space<vmem>>) attributes {dimension_semantics = [#tpu.dimension_semantics<parallel>, #tpu.dimension_semantics<arbitrary>], iteration_bounds = array<i64: 2, 2>, scalar_prefetch = 0 : i64, scratch_operands = 1 : i64, tpu.core_type = #tpu.core_type<tc>, window_params = [{transform_indices = @transform_0, window_bounds = array<i64: 128, 128>}, {transform_indices = @transform_1, window_bounds = array<i64: 128, 128>}, {transform_indices = @transform_2, window_bounds = array<i64: 128, 1>}, {pipeline_mode = #tpu.pipeline_mode<synchronous>, transform_indices = @transform_3, window_bounds = array<i64: 1, 128>}, {transform_indices = @transform_4, window_bounds = array<i64: 128, 128>}]} {
    %c0_i32 = arith.constant 0 : i32
    %0 = arith.cmpi eq, %arg1, %c0_i32 : i32
    %1 = arith.extui %0 : i1 to i32
    %c0_i32_0 = arith.constant 0 : i32
    %2 = arith.cmpi ne, %1, %c0_i32_0 : i32
    scf.if %2 {
      %cst_9 = arith.constant 0.000000e+00 : f32
      %12 = vector.broadcast %cst_9 : f32 to vector<128x128xf32>
      %c0_10 = arith.constant 0 : index
      %c0_11 = arith.constant 0 : index
      %13 = vector.load %arg7[%c0_10, %c0_11] : memref<128x128xf32, #tpu.memory_space<vmem>>, vector<128x128xf32>
      tpu.vector_store %arg7[%c0_10, %c0_11], %12 {strides = array<i32>} : memref<128x128xf32, #tpu.memory_space<vmem>>, vector<128x128xf32>,
    } else {
    }
    %c0 = arith.constant 0 : index
    %c0_1 = arith.constant 0 : index
    %3 = vector.load %arg7[%c0, %c0_1] : memref<128x128xf32, #tpu.memory_space<vmem>>, vector<128x128xf32>
    %c0_2 = arith.constant 0 : index
    %c0_3 = arith.constant 0 : index
    %4 = vector.load %arg2[%c0_2, %c0_3] : memref<128x128xbf16, #tpu.memory_space<vmem>>, vector<128x128xbf16>
    %c0_4 = arith.constant 0 : index
    %c0_5 = arith.constant 0 : index
    %5 = vector.load %arg3[%c0_4, %c0_5] : memref<128x128xbf16, #tpu.memory_space<vmem>>, vector<128x128xbf16>
    %cst = arith.constant dense<0.000000e+00> : vector<128x128xf32>
    %6 = tpu.matmul %4, %5, %cst {dimension_numbers = #tpu.dot_dimension_numbers<[1], [0], [0], [1], [0, 0, 1, 1], [], []>} : vector<128x128xbf16>, vector<128x128xbf16>, vector<128x128xf32> -> vector<128x128xf32>
    %7 = arith.addf %3, %6 : vector<128x128xf32>
    %c0_6 = arith.constant 0 : index
    %c0_7 = arith.constant 0 : index
    %8 = vector.load %arg7[%c0_6, %c0_7] : memref<128x128xf32, #tpu.memory_space<vmem>>, vector<128x128xf32>
    tpu.vector_store %arg7[%c0_6, %c0_7], %7 {strides = array<i32>} : memref<128x128xf32, #tpu.memory_space<vmem>>, vector<128x128xf32>,
    %c1_i32 = arith.constant 1 : i32
    %9 = arith.cmpi eq, %arg1, %c1_i32 : i32
    %10 = arith.extui %9 : i1 to i32
    %c0_i32_8 = arith.constant 0 : i32
    %11 = arith.cmpi ne, %10, %c0_i32_8 : i32
    scf.if %11 {
      %c0_9 = arith.constant 0 : index
      %c0_10 = arith.constant 0 : index
      %12 = vector.load %arg7[%c0_9, %c0_10] : memref<128x128xf32, #tpu.memory_space<vmem>>, vector<128x128xf32>
      %c0_11 = arith.constant 0 : index
      %c0_12 = arith.constant 0 : index
      %13 = vector.load %arg4[%c0_11, %c0_12] : memref<128x1xf32, #tpu.memory_space<vmem>>, vector<128x1xf32>
      %14 = vector.broadcast %13 : vector<128x1xf32> to vector<128x128xf32>
      %15 = arith.mulf %12, %14 : vector<128x128xf32>
      %c0_13 = arith.constant 0 : index
      %c0_14 = arith.constant 0 : index
      %16 = vector.load %arg5[%c0_13, %c0_14] : memref<1x128xf32, #tpu.memory_space<vmem>>, vector<1x128xf32>
      %17 = vector.broadcast %16 : vector<1x128xf32> to vector<128x128xf32>
      %18 = arith.addf %15, %17 : vector<128x128xf32>
      %cst_15 = arith.constant 0.000000e+00 : f32
      %19 = vector.broadcast %cst_15 : f32 to vector<128x128xf32>
      %20 = arith.maximumf %18, %19 : vector<128x128xf32>
      %21 = arith.truncf %20 : vector<128x128xf32> to vector<128x128xbf16>
      %c0_16 = arith.constant 0 : index
      %c0_17 = arith.constant 0 : index
      %22 = vector.load %arg6[%c0_16, %c0_17] : memref<128x128xbf16, #tpu.memory_space<vmem>>, vector<128x128xbf16>
      tpu.vector_store %arg6[%c0_16, %c0_17], %21 {strides = array<i32>} : memref<128x128xbf16, #tpu.memory_space<vmem>>, vector<128x128xbf16>,
    } else {
    }
    return
  }
  func.func @transform_0(%arg0: i32, %arg1: i32) -> (i32, i32) {
    %c0_i32 = arith.constant 0 : i32
    return %arg0, %arg1 : i32, i32
  }
  func.func @transform_1(%arg0: i32, %arg1: i32) -> (i32, i32) {
    %c0_i32 = arith.constant 0 : i32
    %c0_i32_0 = arith.constant 0 : i32
    return %arg1, %c0_i32 : i32, i32
  }
  func.func @transform_2(%arg0: i32, %arg1: i32) -> (i32, i32) {
    %c0_i32 = arith.constant 0 : i32
    %c0_i32_0 = arith.constant 0 : i32
    return %arg0, %c0_i32 : i32, i32
  }
  func.func @transform_3(%arg0: i32, %arg1: i32) -> (i32, i32) {
    %c0_i32 = arith.constant 0 : i32
    %c0_i32_0 = arith.constant 0 : i32
    %c0_i32_1 = arith.constant 0 : i32
    return %c0_i32, %c0_i32_0 : i32, i32
  }
  func.func @transform_4(%arg0: i32, %arg1: i32) -> (i32, i32) {
    %c0_i32 = arith.constant 0 : i32
    %c0_i32_0 = arith.constant 0 : i32
    return %arg0, %c0_i32 : i32, i32
  }
}

module attributes {stable_mosaic.version = 11 : i64} {
  func.func @transform_kernel(%arg0: i32, %arg1: memref<128x128xbf16, #tpu.memory_space<vmem>>, %arg2: memref<128x128xbf16, #tpu.memory_space<vmem>>, %arg3: memref<128x1xf32, #tpu.memory_space<vmem>>, %arg4: memref<128x128xbf16, #tpu.memory_space<vmem>>) attributes {dimension_semantics = [#tpu.dimension_semantics<parallel>], iteration_bounds = array<i64: 2>, scalar_prefetch = 0 : i64, scratch_operands = 0 : i64, tpu.core_type = #tpu.core_type<tc>, window_params = [{transform_indices = @transform_0, window_bounds = array<i64: 128, 128>}, {pipeline_mode = #tpu.pipeline_mode<synchronous>, transform_indices = @transform_1, window_bounds = array<i64: 128, 128>}, {transform_indices = @transform_2, window_bounds = array<i64: 128, 1>}, {transform_indices = @transform_3, window_bounds = array<i64: 128, 128>}]} {
    %c0 = arith.constant 0 : index
    %c0_0 = arith.constant 0 : index
    %0 = vector.load %arg1[%c0, %c0_0] : memref<128x128xbf16, #tpu.memory_space<vmem>>, vector<128x128xbf16>
    %c0_1 = arith.constant 0 : index
    %c0_2 = arith.constant 0 : index
    %1 = vector.load %arg2[%c0_1, %c0_2] : memref<128x128xbf16, #tpu.memory_space<vmem>>, vector<128x128xbf16>
    %cst = arith.constant dense<0.000000e+00> : vector<128x128xf32>
    %2 = tpu.matmul %0, %1, %cst {dimension_numbers = #tpu.dot_dimension_numbers<[1], [0], [0], [1], [0, 0, 1, 1], [], []>} : vector<128x128xbf16>, vector<128x128xbf16>, vector<128x128xf32> -> vector<128x128xf32>
    %c0_3 = arith.constant 0 : index
    %c0_4 = arith.constant 0 : index
    %3 = vector.load %arg3[%c0_3, %c0_4] : memref<128x1xf32, #tpu.memory_space<vmem>>, vector<128x1xf32>
    %4 = vector.broadcast %3 : vector<128x1xf32> to vector<128x128xf32>
    %5 = arith.mulf %2, %4 : vector<128x128xf32>
    %6 = arith.truncf %5 : vector<128x128xf32> to vector<128x128xbf16>
    %c0_5 = arith.constant 0 : index
    %c0_6 = arith.constant 0 : index
    %7 = vector.load %arg4[%c0_5, %c0_6] : memref<128x128xbf16, #tpu.memory_space<vmem>>, vector<128x128xbf16>
    tpu.vector_store %arg4[%c0_5, %c0_6], %6 {strides = array<i32>} : memref<128x128xbf16, #tpu.memory_space<vmem>>, vector<128x128xbf16>,
    return
  }
  func.func @transform_0(%arg0: i32) -> (i32, i32) {
    %c0_i32 = arith.constant 0 : i32
    %c0_i32_0 = arith.constant 0 : i32
    return %arg0, %c0_i32 : i32, i32
  }
  func.func @transform_1(%arg0: i32) -> (i32, i32) {
    %c0_i32 = arith.constant 0 : i32
    %c0_i32_0 = arith.constant 0 : i32
    %c0_i32_1 = arith.constant 0 : i32
    return %c0_i32, %c0_i32_0 : i32, i32
  }
  func.func @transform_2(%arg0: i32) -> (i32, i32) {
    %c0_i32 = arith.constant 0 : i32
    %c0_i32_0 = arith.constant 0 : i32
    return %arg0, %c0_i32 : i32, i32
  }
  func.func @transform_3(%arg0: i32) -> (i32, i32) {
    %c0_i32 = arith.constant 0 : i32
    %c0_i32_0 = arith.constant 0 : i32
    return %arg0, %c0_i32 : i32, i32
  }
}

module attributes {stable_mosaic.version = 11 : i64} {
  func.func @aggregate_kernel(%arg0: i32, %arg1: i32, %arg2: memref<128x128xbf16, #tpu.memory_space<vmem>>, %arg3: memref<128x128xbf16, #tpu.memory_space<vmem>>, %arg4: memref<128x1xf32, #tpu.memory_space<vmem>>, %arg5: memref<1x128xf32, #tpu.memory_space<vmem>>, %arg6: memref<128x128xf32, #tpu.memory_space<vmem>>, %arg7: memref<128x128xf32, #tpu.memory_space<vmem>>) attributes {dimension_semantics = [#tpu.dimension_semantics<parallel>, #tpu.dimension_semantics<arbitrary>], iteration_bounds = array<i64: 2, 2>, scalar_prefetch = 0 : i64, scratch_operands = 1 : i64, tpu.core_type = #tpu.core_type<tc>, window_params = [{transform_indices = @transform_0, window_bounds = array<i64: 128, 128>}, {transform_indices = @transform_1, window_bounds = array<i64: 128, 128>}, {transform_indices = @transform_2, window_bounds = array<i64: 128, 1>}, {pipeline_mode = #tpu.pipeline_mode<synchronous>, transform_indices = @transform_3, window_bounds = array<i64: 1, 128>}, {transform_indices = @transform_4, window_bounds = array<i64: 128, 128>}]} {
    %c0_i32 = arith.constant 0 : i32
    %0 = arith.cmpi eq, %arg1, %c0_i32 : i32
    %1 = arith.extui %0 : i1 to i32
    %c0_i32_0 = arith.constant 0 : i32
    %2 = arith.cmpi ne, %1, %c0_i32_0 : i32
    scf.if %2 {
      %cst_9 = arith.constant 0.000000e+00 : f32
      %12 = vector.broadcast %cst_9 : f32 to vector<128x128xf32>
      %c0_10 = arith.constant 0 : index
      %c0_11 = arith.constant 0 : index
      %13 = vector.load %arg7[%c0_10, %c0_11] : memref<128x128xf32, #tpu.memory_space<vmem>>, vector<128x128xf32>
      tpu.vector_store %arg7[%c0_10, %c0_11], %12 {strides = array<i32>} : memref<128x128xf32, #tpu.memory_space<vmem>>, vector<128x128xf32>,
    } else {
    }
    %c0 = arith.constant 0 : index
    %c0_1 = arith.constant 0 : index
    %3 = vector.load %arg7[%c0, %c0_1] : memref<128x128xf32, #tpu.memory_space<vmem>>, vector<128x128xf32>
    %c0_2 = arith.constant 0 : index
    %c0_3 = arith.constant 0 : index
    %4 = vector.load %arg2[%c0_2, %c0_3] : memref<128x128xbf16, #tpu.memory_space<vmem>>, vector<128x128xbf16>
    %c0_4 = arith.constant 0 : index
    %c0_5 = arith.constant 0 : index
    %5 = vector.load %arg3[%c0_4, %c0_5] : memref<128x128xbf16, #tpu.memory_space<vmem>>, vector<128x128xbf16>
    %cst = arith.constant dense<0.000000e+00> : vector<128x128xf32>
    %6 = tpu.matmul %4, %5, %cst {dimension_numbers = #tpu.dot_dimension_numbers<[1], [0], [0], [1], [0, 0, 1, 1], [], []>} : vector<128x128xbf16>, vector<128x128xbf16>, vector<128x128xf32> -> vector<128x128xf32>
    %7 = arith.addf %3, %6 : vector<128x128xf32>
    %c0_6 = arith.constant 0 : index
    %c0_7 = arith.constant 0 : index
    %8 = vector.load %arg7[%c0_6, %c0_7] : memref<128x128xf32, #tpu.memory_space<vmem>>, vector<128x128xf32>
    tpu.vector_store %arg7[%c0_6, %c0_7], %7 {strides = array<i32>} : memref<128x128xf32, #tpu.memory_space<vmem>>, vector<128x128xf32>,
    %c1_i32 = arith.constant 1 : i32
    %9 = arith.cmpi eq, %arg1, %c1_i32 : i32
    %10 = arith.extui %9 : i1 to i32
    %c0_i32_8 = arith.constant 0 : i32
    %11 = arith.cmpi ne, %10, %c0_i32_8 : i32
    scf.if %11 {
      %c0_9 = arith.constant 0 : index
      %c0_10 = arith.constant 0 : index
      %12 = vector.load %arg7[%c0_9, %c0_10] : memref<128x128xf32, #tpu.memory_space<vmem>>, vector<128x128xf32>
      %c0_11 = arith.constant 0 : index
      %c0_12 = arith.constant 0 : index
      %13 = vector.load %arg4[%c0_11, %c0_12] : memref<128x1xf32, #tpu.memory_space<vmem>>, vector<128x1xf32>
      %14 = vector.broadcast %13 : vector<128x1xf32> to vector<128x128xf32>
      %15 = arith.mulf %12, %14 : vector<128x128xf32>
      %c0_13 = arith.constant 0 : index
      %c0_14 = arith.constant 0 : index
      %16 = vector.load %arg5[%c0_13, %c0_14] : memref<1x128xf32, #tpu.memory_space<vmem>>, vector<1x128xf32>
      %17 = vector.broadcast %16 : vector<1x128xf32> to vector<128x128xf32>
      %18 = arith.addf %15, %17 : vector<128x128xf32>
      %c0_15 = arith.constant 0 : index
      %c0_16 = arith.constant 0 : index
      %19 = vector.load %arg6[%c0_15, %c0_16] : memref<128x128xf32, #tpu.memory_space<vmem>>, vector<128x128xf32>
      tpu.vector_store %arg6[%c0_15, %c0_16], %18 {strides = array<i32>} : memref<128x128xf32, #tpu.memory_space<vmem>>, vector<128x128xf32>,
    } else {
    }
    return
  }
  func.func @transform_0(%arg0: i32, %arg1: i32) -> (i32, i32) {
    %c0_i32 = arith.constant 0 : i32
    return %arg0, %arg1 : i32, i32
  }
  func.func @transform_1(%arg0: i32, %arg1: i32) -> (i32, i32) {
    %c0_i32 = arith.constant 0 : i32
    %c0_i32_0 = arith.constant 0 : i32
    return %arg1, %c0_i32 : i32, i32
  }
  func.func @transform_2(%arg0: i32, %arg1: i32) -> (i32, i32) {
    %c0_i32 = arith.constant 0 : i32
    %c0_i32_0 = arith.constant 0 : i32
    return %arg0, %c0_i32 : i32, i32
  }
  func.func @transform_3(%arg0: i32, %arg1: i32) -> (i32, i32) {
    %c0_i32 = arith.constant 0 : i32
    %c0_i32_0 = arith.constant 0 : i32
    %c0_i32_1 = arith.constant 0 : i32
    return %c0_i32, %c0_i32_0 : i32, i32
  }
  func.func @transform_4(%arg0: i32, %arg1: i32) -> (i32, i32) {
    %c0_i32 = arith.constant 0 : i32
    %c0_i32_0 = arith.constant 0 : i32
    return %arg0, %c0_i32 : i32, i32
  }
}

</mosaic_0001>

<llo_original>
// kernel: gnn_conv_forward.5
$region0: #{gnn_conv_forward.5}
  #allocation0 [shape = 'u32[]', space=smem, size = 0x4, offset = 0x4, fixed_abs, tag = 'smem constant byte address 0x4 - core index']
  #allocation1 [shape = 'u32[72,128]{1,0:T(1,128)}', space=vmem, size = 0x9000, scoped, tag = 'internal scratch']
  #allocation2 [shape = 'f32[128,128]{1,0:T(8,128)}', space=vmem, size = 0x10000, scoped, tag = 'scratch operand']
  %s0 = inlined_call_operand.vmem [shape: bf16[256,256], index: 0, kind: input, shape index: {}]
  %s1 = inlined_call_operand.vmem [shape: bf16[256,128], index: 1, kind: input, shape index: {}]
  %s2 = inlined_call_operand.vmem [shape: f32[256,1], index: 2, kind: input, shape index: {}]
  %s3 = inlined_call_operand.vmem [shape: f32[1,128], index: 3, kind: input, shape index: {}]
  %s4 = inlined_call_operand.vmem [shape: bf16[256,128], index: 4, kind: output, shape index: {}]
  %s5 = sld [smem:[#allocation0]]
  $region98: #{gnn_conv_forward.5} parent=0
    _
  %s7 = ssub.s32 1, %s5
  %s8 = scalar_select 0, %s7, %s5
  $region1: #{gnn_conv_forward.5} parent=0
    #allocation3 [shape = 'u8[65536]{0}', space=vmem, size = 0x10000, scoped, tag = 'input window, operand 0']
    loop: start=0, step=1, limit=6
    $region2: #{gnn_conv_forward.5} parent=1 // loop_pre_header
      _
    $region3: #{gnn_conv_forward.5} parent=1 // loop_header
      %s10 = sphi 0, %s14
      %p11 = scmp.ge.s32.totalorder %s10, 6
      %s17 = sphi 0, %s29
      %s18 = sphi 0, %s25
      %s19 = sphi 0, %s17
      %s20 = sphi 0, %s18
      %s21 = sphi 0, %s19
      %s22 = sphi 0, %s20
      %s34 = sphi 0, %s36
      %s37 = sphi 0, %s34
      %s38 = sphi 0, %s37
      %s54 = sphi 0, %s38
      %s60 = sphi 0, %s62
      %s63 = sphi 0, %s60
      %s64 = sphi 0, %s63
      %s80 = sphi 0, %s64
      %s86 = sphi 0, %s88
      %s89 = sphi 0, %s86
      %s90 = sphi 0, %s89
      %s106 = sphi 0, %s90
      %s110 = sphi 0, %s110
      %s112 = sphi 0, %s110
      %s113 = sphi 0, %s112
      %s127 = sphi 0, %s113
      %s133 = sphi 0, %s135
      %s136 = sphi 0, %s133
      %s137 = sphi 0, %s136
      %s153 = sphi 0, %s137
    $region4: #{gnn_conv_forward.5} parent=1 // loop_header_branch
      %13 = sbr.rel (%p11) target = $region8
    $region5: #{gnn_conv_forward.5} parent=1 // loop_body
      %s15 = ssub.s32 %s10, 1
      %s16 = ssub.s32 %s10, 2
      %s23 = sadd.s32 1, %s18
      %p24 = scmp.ge.s32.totalorder %s23, 2
      %s25 = scalar_select %p24, 0, %s23
      %s26 = sadd.s32 1, %s17
      %s27 = scalar_select %p24, %s26, %s17
      %p28 = scmp.ge.s32.totalorder %s27, 2
      %s29 = scalar_select %p28, 0, %s27
      %s30 = ssub.s32 %s17, %s29
      %s31 = ssub.s32 %s18, %s25
      %s32 = sor.u32 %s30, %s31
      %p33 = scmp.eq.s32.totalorder %s32, 0
      %s35 = sadd.s32 %s34, 1
      %s36 = scalar_select %p33, %s34, %s35
      %p39 = pneg %p33
      %p40 = scmp.eq.s32.totalorder %s10, 3
      %p41 = por %p39, %p40
      %p42 = scmp.ne.s32.totalorder %s34, %s37
      %p43 = scmp.eq.s32.totalorder %s10, 0
      %p44 = por %p42, %p43
      %p45 = scmp.ne.s32.totalorder %s34, %s37
      %p46 = scmp.eq.s32.totalorder %s15, 3
      %p47 = por %p45, %p46
      %p48 = scmp.ne.s32.totalorder %s37, %s38
      %p49 = scmp.eq.s32.totalorder %s15, 0
      %p50 = por %p48, %p49
      %p51 = scmp.ne.s32.totalorder %s37, %s38
      %p52 = scmp.eq.s32.totalorder %s16, 3
      %p53 = por %p51, %p52
      %p55 = scmp.ne.s32.totalorder %s38, %s54
      %p56 = scmp.eq.s32.totalorder %s16, 0
      %p57 = por %p55, %p56
      %s58 = ssub.s32 %s18, %s25
      %p59 = scmp.eq.s32.totalorder %s58, 0
      %s61 = sadd.s32 %s60, 1
      %s62 = scalar_select %p59, %s60, %s61
      %p65 = pneg %p59
      %p66 = scmp.eq.s32.totalorder %s10, 3
      %p67 = por %p65, %p66
      %p68 = scmp.ne.s32.totalorder %s60, %s63
      %p69 = scmp.eq.s32.totalorder %s10, 0
      %p70 = por %p68, %p69
      %p71 = scmp.ne.s32.totalorder %s60, %s63
      %p72 = scmp.eq.s32.totalorder %s15, 3
      %p73 = por %p71, %p72
      %p74 = scmp.ne.s32.totalorder %s63, %s64
      %p75 = scmp.eq.s32.totalorder %s15, 0
      %p76 = por %p74, %p75
      %p77 = scmp.ne.s32.totalorder %s63, %s64
      %p78 = scmp.eq.s32.totalorder %s16, 3
      %p79 = por %p77, %p78
      %p81 = scmp.ne.s32.totalorder %s64, %s80
      %p82 = scmp.eq.s32.totalorder %s16, 0
      %p83 = por %p81, %p82
      %s84 = ssub.s32 %s17, %s29
      %p85 = scmp.eq.s32.totalorder %s84, 0
      %s87 = sadd.s32 %s86, 1
      %s88 = scalar_select %p85, %s86, %s87
      %p91 = pneg %p85
      %p92 = scmp.eq.s32.totalorder %s10, 3
      %p93 = por %p91, %p92
      %p94 = scmp.ne.s32.totalorder %s86, %s89
      %p95 = scmp.eq.s32.totalorder %s10, 0
      %p96 = por %p94, %p95
      %p97 = scmp.ne.s32.totalorder %s86, %s89
      %p98 = scmp.eq.s32.totalorder %s15, 3
      %p99 = por %p97, %p98
      %p100 = scmp.ne.s32.totalorder %s89, %s90
      %p101 = scmp.eq.s32.totalorder %s15, 0
      %p102 = por %p100, %p101
      %p103 = scmp.ne.s32.totalorder %s89, %s90
      %p104 = scmp.eq.s32.totalorder %s16, 3
      %p105 = por %p103, %p104
      %p107 = scmp.ne.s32.totalorder %s90, %s106
      %p108 = scmp.eq.s32.totalorder %s16, 0
      %p109 = por %p107, %p108
      %s111 = sadd.s32 %s110, 1
      %p114 = scmp.eq.s32.totalorder %s10, 3
      %p115 = scmp.ne.s32.totalorder %s110, %s112
      %p116 = scmp.eq.s32.totalorder %s10, 0
      %p117 = por %p115, %p116
      %p118 = scmp.ne.s32.totalorder %s110, %s112
      %p119 = scmp.eq.s32.totalorder %s15, 3
      %p120 = por %p118, %p119
      %p121 = scmp.ne.s32.totalorder %s112, %s113
      %p122 = scmp.eq.s32.totalorder %s15, 0
      %p123 = por %p121, %p122
      %p124 = scmp.ne.s32.totalorder %s112, %s113
      %p125 = scmp.eq.s32.totalorder %s16, 3
      %p126 = por %p124, %p125
      %p128 = scmp.ne.s32.totalorder %s113, %s127
      %p129 = scmp.eq.s32.totalorder %s16, 0
      %p130 = por %p128, %p129
      %s131 = ssub.s32 %s17, %s29
      %p132 = scmp.eq.s32.totalorder %s131, 0
      %s134 = sadd.s32 %s133, 1
      %s135 = scalar_select %p132, %s133, %s134
      %p138 = pneg %p132
      %p139 = scmp.eq.s32.totalorder %s10, 3
      %p140 = por %p138, %p139
      %p141 = scmp.ne.s32.totalorder %s133, %s136
      %p142 = scmp.eq.s32.totalorder %s10, 0
      %p143 = por %p141, %p142
      %p144 = scmp.ne.s32.totalorder %s133, %s136
      %p145 = scmp.eq.s32.totalorder %s15, 3
      %p146 = por %p144, %p145
      %p147 = scmp.ne.s32.totalorder %s136, %s137
      %p148 = scmp.eq.s32.totalorder %s15, 0
      %p149 = por %p147, %p148
      %p150 = scmp.ne.s32.totalorder %s136, %s137
      %p151 = scmp.eq.s32.totalorder %s16, 3
      %p152 = por %p150, %p151
      %p154 = scmp.ne.s32.totalorder %s137, %s153
      %p155 = scmp.eq.s32.totalorder %s16, 0
      %p156 = por %p154, %p155
      %p157 = scmp.le.s32.totalorder 1, %s10
      %p158 = scmp.lt.s32.totalorder %s10, 5
      %p159 = pnand %p157, %p158
      %p160 = pneg %p159
      // Predicated region
      $region9: #{gnn_conv_forward.5} parent=5 // pred_check
        _
      $region10: #{gnn_conv_forward.5} parent=5 // pred_check_branch
        %162 = sbr.rel (%p159) target = $region12
      $region11: #{gnn_conv_forward.5} parent=5 // pred_region
        %s163 = ssub.s32 %s10, 1
        // Predicated region
        $region13: #{gnn_conv_forward.5} parent=11 // pred_check
          %p164 = pneg %p123
        $region14: #{gnn_conv_forward.5} parent=11 // pred_check_branch
          %166 = sbr.rel (%p164) target = $region16
        $region15: #{gnn_conv_forward.5} parent=11 // pred_region
          _
        $region16: #{gnn_conv_forward.5} parent=11 // pred_fallthru
          _
      $region12: #{gnn_conv_forward.5} parent=5 // pred_fallthru
        _
      %p167 = scmp.lt.s32.totalorder %s10, 4
      // Predicated region
      $region17: #{gnn_conv_forward.5} parent=5 // pred_check
        %p168 = pneg %p167
      $region18: #{gnn_conv_forward.5} parent=5 // pred_check_branch
        %170 = sbr.rel (%p168) target = $region20
      $region19: #{gnn_conv_forward.5} parent=5 // pred_region
        // Predicated region
        $region21: #{gnn_conv_forward.5} parent=19 // pred_check
          %p171 = pneg %p44
        $region22: #{gnn_conv_forward.5} parent=19 // pred_check_branch
          %173 = sbr.rel (%p171) target = $region24
        $region23: #{gnn_conv_forward.5} parent=19 // pred_region
          %s174 = sand.u32 %s34, 1
          %s175 = sand.u32 %s34, 1
          %s176 = smul.addr %s175, 64
          %s177 = scalar_lea.vmem [#allocation3], %s176
          %s178 = smul.u32 16, %s17
          %s179 = smul.addr %s178, 2
          %s180 = sadd.s32 %s18, %s179
          %s181 = smul.addr %s180, 4
          %s182 = scalar_lea.vmem %s0, %s181
          // Predicated region
          $region25: #{gnn_conv_forward.5} parent=23 // pred_check
            _
          $region26: #{gnn_conv_forward.5} parent=23 // pred_check_branch
            %184 = sbr.rel (0) target = $region28
          $region27: #{gnn_conv_forward.5} parent=23 // pred_region
            // Predicated region
            $region29: #{gnn_conv_forward.5} parent=27 // pred_check
              _
            $region30: #{gnn_conv_forward.5} parent=27 // pred_check_branch
              %186 = sbr.rel target = $region32
            $region31: #{gnn_conv_forward.5} parent=27 // pred_region
              // Predicated region
              $region44: #{gnn_conv_forward.5} parent=31 // pred_check
                _
              $region45: #{gnn_conv_forward.5} parent=31 // pred_check_branch
                %232 = sbr.rel (0) target = $region47
              $region46: #{gnn_conv_forward.5} parent=31 // pred_region
                loop: start=0, step=1, limit=1
                $region48: #{gnn_conv_forward.5} parent=46 // loop_pre_header
                  _
                $region49: #{gnn_conv_forward.5} parent=46 // loop_header
                  %s234 = sphi 0, %s238
                  %p235 = scmp.ge.s32.totalorder %s234, 1
                  %s239 = sphi %s182, %s182
                  %s240 = sphi %s177, %s177
                $region50: #{gnn_conv_forward.5} parent=46 // loop_header_branch
                  %237 = sbr.rel (%p235) target = $region54
                $region51: #{gnn_conv_forward.5} parent=46 // loop_body
                  _
                $region52: #{gnn_conv_forward.5} parent=46 // loop_footer
                  %s238 = sadd.s32 1, %s234
                $region53: #{gnn_conv_forward.5} parent=46 // loop_footer_branch
                  %233 = sbr.rel target = $region49
                $region54: #{gnn_conv_forward.5} parent=46 // loop_exit
                  _
                %s242 = ssub.s32 16, 1
                loop: start=0, step=1, limit=1
                $region55: #{gnn_conv_forward.5} parent=46 // loop_pre_header
                  _
                $region56: #{gnn_conv_forward.5} parent=46 // loop_header
                  %s244 = sphi 0, %s248
                  %p245 = scmp.ge.s32.totalorder %s244, 1
                  %s249 = sphi %s182, %s182
                  %s250 = sphi %s177, %s177
                $region57: #{gnn_conv_forward.5} parent=46 // loop_header_branch
                  %247 = sbr.rel (%p245) target = $region61
                $region58: #{gnn_conv_forward.5} parent=46 // loop_body
                  %v251 = vld [vmem:[%s249] sm:%s242]
                  %252 = vst [vmem:[%s250] sm:%s242] %v251
                  %v253 = vld [vmem:[%s249 + $0x8] sm:%s242]
                  %254 = vst [vmem:[%s250 + $0x4] sm:%s242] %v253
                  %v255 = vld [vmem:[%s249 + $0x10] sm:%s242]
                  %256 = vst [vmem:[%s250 + $0x8] sm:%s242] %v255
                  %v257 = vld [vmem:[%s249 + $0x18] sm:%s242]
                  %258 = vst [vmem:[%s250 + $0xc] sm:%s242] %v257
                  %v259 = vld [vmem:[%s249 + $0x20] sm:%s242]
                  %260 = vst [vmem:[%s250 + $0x10] sm:%s242] %v259
                  %v261 = vld [vmem:[%s249 + $0x28] sm:%s242]
                  %262 = vst [vmem:[%s250 + $0x14] sm:%s242] %v261
                  %v263 = vld [vmem:[%s249 + $0x30] sm:%s242]
                  %264 = vst [vmem:[%s250 + $0x18] sm:%s242] %v263
                  %v265 = vld [vmem:[%s249 + $0x38] sm:%s242]
                  %266 = vst [vmem:[%s250 + $0x1c] sm:%s242] %v265
                  %v267 = vld [vmem:[%s249 + $0x40] sm:%s242]
                  %268 = vst [vmem:[%s250 + $0x20] sm:%s242] %v267
                  %v269 = vld [vmem:[%s249 + $0x48] sm:%s242]
                  %270 = vst [vmem:[%s250 + $0x24] sm:%s242] %v269
                  %v271 = vld [vmem:[%s249 + $0x50] sm:%s242]
                  %272 = vst [vmem:[%s250 + $0x28] sm:%s242] %v271
                  %v273 = vld [vmem:[%s249 + $0x58] sm:%s242]
                  %274 = vst [vmem:[%s250 + $0x2c] sm:%s242] %v273
                  %v275 = vld [vmem:[%s249 + $0x60] sm:%s242]
                  %276 = vst [vmem:[%s250 + $0x30] sm:%s242] %v275
                  %v277 = vld [vmem:[%s249 + $0x68] sm:%s242]
                  %278 = vst [vmem:[%s250 + $0x34] sm:%s242] %v277
                  %v279 = vld [vmem:[%s249 + $0x70] sm:%s242]
                  %280 = vst [vmem:[%s250 + $0x38] sm:%s242] %v279
                  %v281 = vld [vmem:[%s249 + $0x78] sm:%s242]
                  %282 = vst [vmem:[%s250 + $0x3c] sm:%s242] %v281
                $region59: #{gnn_conv_forward.5} parent=46 // loop_footer
                  %s248 = sadd.s32 1, %s244
                $region60: #{gnn_conv_forward.5} parent=46 // loop_footer_branch
                  %243 = sbr.rel target = $region56
                $region61: #{gnn_conv_forward.5} parent=46 // loop_exit
                  _
              $region47: #{gnn_conv_forward.5} parent=31 // pred_fallthru
                _
            $region32: #{gnn_conv_forward.5} parent=27 // pred_fallthru
              _
            // Predicated region
            $region33: #{gnn_conv_forward.5} parent=27 // pred_check
              _
            $region34: #{gnn_conv_forward.5} parent=27 // pred_check_branch
              %188 = sbr.rel (0) target = $region36
            $region35: #{gnn_conv_forward.5} parent=27 // pred_region
              %s190 = ssub.s32 16, 1
              loop: start=0, step=1, limit=1
              $region37: #{gnn_conv_forward.5} parent=35 // loop_pre_header
                _
              $region38: #{gnn_conv_forward.5} parent=35 // loop_header
                %s192 = sphi 0, %s196
                %p193 = scmp.ge.s32.totalorder %s192, 1
                %s197 = sphi %s182, %s182
                %s198 = sphi %s177, %s177
              $region39: #{gnn_conv_forward.5} parent=35 // loop_header_branch
                %195 = sbr.rel (%p193) target = $region43
              $region40: #{gnn_conv_forward.5} parent=35 // loop_body
                %v199 = vld [vmem:[%s197] sm:%s190]
                %200 = vst [vmem:[%s198] sm:%s190] %v199
                %v201 = vld [vmem:[%s197 + $0x8] sm:%s190]
                %202 = vst [vmem:[%s198 + $0x4] sm:%s190] %v201
                %v203 = vld [vmem:[%s197 + $0x10] sm:%s190]
                %204 = vst [vmem:[%s198 + $0x8] sm:%s190] %v203
                %v205 = vld [vmem:[%s197 + $0x18] sm:%s190]
                %206 = vst [vmem:[%s198 + $0xc] sm:%s190] %v205
                %v207 = vld [vmem:[%s197 + $0x20] sm:%s190]
                %208 = vst [vmem:[%s198 + $0x10] sm:%s190] %v207
                %v209 = vld [vmem:[%s197 + $0x28] sm:%s190]
                %210 = vst [vmem:[%s198 + $0x14] sm:%s190] %v209
                %v211 = vld [vmem:[%s197 + $0x30] sm:%s190]
                %212 = vst [vmem:[%s198 + $0x18] sm:%s190] %v211
                %v213 = vld [vmem:[%s197 + $0x38] sm:%s190]
                %214 = vst [vmem:[%s198 + $0x1c] sm:%s190] %v213
                %v215 = vld [vmem:[%s197 + $0x40] sm:%s190]
                %216 = vst [vmem:[%s198 + $0x20] sm:%s190] %v215
                %v217 = vld [vmem:[%s197 + $0x48] sm:%s190]
                %218 = vst [vmem:[%s198 + $0x24] sm:%s190] %v217
                %v219 = vld [vmem:[%s197 + $0x50] sm:%s190]
                %220 = vst [vmem:[%s198 + $0x28] sm:%s190] %v219
                %v221 = vld [vmem:[%s197 + $0x58] sm:%s190]
                %222 = vst [vmem:[%s198 + $0x2c] sm:%s190] %v221
                %v223 = vld [vmem:[%s197 + $0x60] sm:%s190]
                %224 = vst [vmem:[%s198 + $0x30] sm:%s190] %v223
                %v225 = vld [vmem:[%s197 + $0x68] sm:%s190]
                %226 = vst [vmem:[%s198 + $0x34] sm:%s190] %v225
                %v227 = vld [vmem:[%s197 + $0x70] sm:%s190]
                %228 = vst [vmem:[%s198 + $0x38] sm:%s190] %v227
                %v229 = vld [vmem:[%s197 + $0x78] sm:%s190]
                %230 = vst [vmem:[%s198 + $0x3c] sm:%s190] %v229
              $region41: #{gnn_conv_forward.5} parent=35 // loop_footer
                %s196 = sadd.s32 1, %s192
              $region42: #{gnn_conv_forward.5} parent=35 // loop_footer_branch
                %191 = sbr.rel target = $region38
              $region43: #{gnn_conv_forward.5} parent=35 // loop_exit
                _
            $region36: #{gnn_conv_forward.5} parent=27 // pred_fallthru
              _
          $region28: #{gnn_conv_forward.5} parent=23 // pred_fallthru
            _
          %283 = vnop
        $region24: #{gnn_conv_forward.5} parent=19 // pred_fallthru
          _
        // Predicated region
        $region62: #{gnn_conv_forward.5} parent=19 // pred_check
          %p284 = pneg %p70
        $region63: #{gnn_conv_forward.5} parent=19 // pred_check_branch
          %286 = sbr.rel (%p284) target = $region65
        $region64: #{gnn_conv_forward.5} parent=19 // pred_region
          %s287 = smul.u32 16, %s18
          %p288 = scmp.lt.s32.totalorder %s287, 31
          %s289 = scalar_select %p288, %s287, 31
          %s290 = smul.addr %s289, 4
          %s291 = scalar_lea.vmem %s1, %s290
          %s292 = smul.u32 16, %s18
        $region65: #{gnn_conv_forward.5} parent=19 // pred_fallthru
          _
        // Predicated region
        $region66: #{gnn_conv_forward.5} parent=19 // pred_check
          %p293 = pneg %p96
        $region67: #{gnn_conv_forward.5} parent=19 // pred_check_branch
          %295 = sbr.rel (%p293) target = $region69
        $region68: #{gnn_conv_forward.5} parent=19 // pred_region
          %s296 = smul.u32 16, %s17
          %p297 = scmp.lt.s32.totalorder %s296, 31
          %s298 = scalar_select %p297, %s296, 31
          %s299 = smul.addr %s298, 8
          %s300 = scalar_lea.vmem %s2, %s299
          %s301 = smul.u32 16, %s17
        $region69: #{gnn_conv_forward.5} parent=19 // pred_fallthru
          _
      $region20: #{gnn_conv_forward.5} parent=5 // pred_fallthru
        _
      %p302 = scmp.le.s32.totalorder 1, %s10
      %p303 = scmp.lt.s32.totalorder %s10, 5
      %p304 = pnand %p302, %p303
      %p305 = pneg %p304
      // Predicated region
      $region70: #{gnn_conv_forward.5} parent=5 // pred_check
        _
      $region71: #{gnn_conv_forward.5} parent=5 // pred_check_branch
        %307 = sbr.rel (%p304) target = $region73
      $region72: #{gnn_conv_forward.5} parent=5 // pred_region
        %s308 = ssub.s32 %s10, 1
        %s309 = sand.u32 %s37, 1
        %s310 = sand.u32 %s37, 1
        %s311 = smul.addr %s310, 64
        %s312 = scalar_lea.vmem [#allocation3], %s311
        // Predicated region
        $region74: #{gnn_conv_forward.5} parent=72 // pred_check
          %p313 = pneg %p50
        $region75: #{gnn_conv_forward.5} parent=72 // pred_check_branch
          %315 = sbr.rel (%p313) target = $region77
        $region76: #{gnn_conv_forward.5} parent=72 // pred_region
          _
        $region77: #{gnn_conv_forward.5} parent=72 // pred_fallthru
          _
        %s316 = sand.u32 %s37, 1
        %s317 = sand.u32 %s37, 1
        %s318 = smul.addr %s317, 64
        %s319 = scalar_lea.vmem [#allocation3], %s318
        %p320 = pneg %p50
        %p321 = pneg %p47
        %s322 = smul.u32 16, %s20
        %p323 = scmp.lt.s32.totalorder %s322, 31
        %s324 = scalar_select %p323, %s322, 31
        %s325 = smul.addr %s324, 4
        %s326 = scalar_lea.vmem %s1, %s325
        %p327 = pneg %p76
        %p328 = pneg %p73
        %s329 = smul.u32 16, %s19
        %p330 = scmp.lt.s32.totalorder %s329, 31
        %s331 = scalar_select %p330, %s329, 31
        %s332 = smul.addr %s331, 8
        %s333 = scalar_lea.vmem %s2, %s332
        %p334 = pneg %p102
        %p335 = pneg %p99
        %p336 = pneg %p123
        %p337 = pneg %p120
        %p338 = pneg %p149
        %p339 = pneg %p146
        %s340 = smul.u32 16, %s19
        %p341 = scmp.lt.s32.totalorder %s340, 31
        %s342 = scalar_select %p341, %s340, 31
        %s343 = smul.addr %s342, 4
        %s344 = scalar_lea.vmem %s4, %s343
        %s345 = smul.u32 16, %s19
        %s346 = smul.u32 16, %s20
        %p347 = scmp.lt.s32.totalorder %s346, 31
        %s348 = scalar_select %p347, %s346, 31
        %s349 = smul.addr %s348, 4
        %s350 = scalar_lea.vmem %s1, %s349
        %s351 = smul.u32 16, %s20
        %s352 = smul.u32 16, %s19
        %p353 = scmp.lt.s32.totalorder %s352, 31
        %s354 = scalar_select %p353, %s352, 31
        %s355 = smul.addr %s354, 8
        %s356 = scalar_lea.vmem %s2, %s355
        %s357 = smul.u32 16, %s19
        %s358 = smul.u32 16, %s19
        %p359 = scmp.lt.s32.totalorder %s358, 31
        %s360 = scalar_select %p359, %s358, 31
        %s361 = smul.addr %s360, 4
        %s362 = scalar_lea.vmem %s4, %s361
        %s363 = smul.u32 16, %s19
        %p364 = scmp.eq.s32.totalorder %s20, 0
        // Predicated region
        $region78: #{gnn_conv_forward.5} parent=72 // pred_check
          %p365 = pneg %p364
        $region79: #{gnn_conv_forward.5} parent=72 // pred_check_branch
          %367 = sbr.rel (%p365) target = $region81
        $region80: #{gnn_conv_forward.5} parent=72 // pred_region
          %368 = vst [vmem:[#allocation2] sm:$0xff] 0.0
          %369 = vst [vmem:[#allocation2 + $0x8] sm:$0xff] 0.0
          %370 = vst [vmem:[#allocation2 + $0x10] sm:$0xff] 0.0
          %371 = vst [vmem:[#allocation2 + $0x18] sm:$0xff] 0.0
          %372 = vst [vmem:[#allocation2 + $0x20] sm:$0xff] 0.0
          %373 = vst [vmem:[#allocation2 + $0x28] sm:$0xff] 0.0
          %374 = vst [vmem:[#allocation2 + $0x30] sm:$0xff] 0.0
          %375 = vst [vmem:[#allocation2 + $0x38] sm:$0xff] 0.0
          %376 = vst [vmem:[#allocation2 + $0x40] sm:$0xff] 0.0
          %377 = vst [vmem:[#allocation2 + $0x48] sm:$0xff] 0.0
          %378 = vst [vmem:[#allocation2 + $0x50] sm:$0xff] 0.0
          %379 = vst [vmem:[#allocation2 + $0x58] sm:$0xff] 0.0
          %380 = vst [vmem:[#allocation2 + $0x60] sm:$0xff] 0.0
          %381 = vst [vmem:[#allocation2 + $0x68] sm:$0xff] 0.0
          %382 = vst [vmem:[#allocation2 + $0x70] sm:$0xff] 0.0
          %383 = vst [vmem:[#allocation2 + $0x78] sm:$0xff] 0.0
        $region81: #{gnn_conv_forward.5} parent=72 // pred_fallthru
          _
        %v384 = vld [vmem:[#allocation2] sm:$0xff]
        %v385 = vld [vmem:[#allocation2 + $0x8] sm:$0xff]
        %v386 = vld [vmem:[#allocation2 + $0x10] sm:$0xff]
        %v387 = vld [vmem:[#allocation2 + $0x18] sm:$0xff]
        %v388 = vld [vmem:[#allocation2 + $0x20] sm:$0xff]
        %v389 = vld [vmem:[#allocation2 + $0x28] sm:$0xff]
        %v390 = vld [vmem:[#allocation2 + $0x30] sm:$0xff]
        %v391 = vld [vmem:[#allocation2 + $0x38] sm:$0xff]
        %v392 = vld [vmem:[#allocation2 + $0x40] sm:$0xff]
        %v393 = vld [vmem:[#allocation2 + $0x48] sm:$0xff]
        %v394 = vld [vmem:[#allocation2 + $0x50] sm:$0xff]
        %v395 = vld [vmem:[#allocation2 + $0x58] sm:$0xff]
        %v396 = vld [vmem:[#allocation2 + $0x60] sm:$0xff]
        %v397 = vld [vmem:[#allocation2 + $0x68] sm:$0xff]
        %v398 = vld [vmem:[#allocation2 + $0x70] sm:$0xff]
        %v399 = vld [vmem:[#allocation2 + $0x78] sm:$0xff]
        %v400 = vld [vmem:[%s312] sm:$0xf]
        %v401 = vld [vmem:[%s312 + $0x4] sm:$0xf]
        %v402 = vld [vmem:[%s312 + $0x8] sm:$0xf]
        %v403 = vld [vmem:[%s312 + $0xc] sm:$0xf]
        %v404 = vld [vmem:[%s312 + $0x10] sm:$0xf]
        %v405 = vld [vmem:[%s312 + $0x14] sm:$0xf]
        %v406 = vld [vmem:[%s312 + $0x18] sm:$0xf]
        %v407 = vld [vmem:[%s312 + $0x1c] sm:$0xf]
        %v408 = vld [vmem:[%s312 + $0x20] sm:$0xf]
        %v409 = vld [vmem:[%s312 + $0x24] sm:$0xf]
        %v410 = vld [vmem:[%s312 + $0x28] sm:$0xf]
        %v411 = vld [vmem:[%s312 + $0x2c] sm:$0xf]
        %v412 = vld [vmem:[%s312 + $0x30] sm:$0xf]
        %v413 = vld [vmem:[%s312 + $0x34] sm:$0xf]
        %v414 = vld [vmem:[%s312 + $0x38] sm:$0xf]
        %v415 = vld [vmem:[%s312 + $0x3c] sm:$0xf]
        %v416 = vld [vmem:[%s350] sm:$0xf]
        %v417 = vld [vmem:[%s350 + $0x4] sm:$0xf]
        %v418 = vld [vmem:[%s350 + $0x8] sm:$0xf]
        %v419 = vld [vmem:[%s350 + $0xc] sm:$0xf]
        %v420 = vld [vmem:[%s350 + $0x10] sm:$0xf]
        %v421 = vld [vmem:[%s350 + $0x14] sm:$0xf]
        %v422 = vld [vmem:[%s350 + $0x18] sm:$0xf]
        %v423 = vld [vmem:[%s350 + $0x1c] sm:$0xf]
        %v424 = vld [vmem:[%s350 + $0x20] sm:$0xf]
        %v425 = vld [vmem:[%s350 + $0x24] sm:$0xf]
        %v426 = vld [vmem:[%s350 + $0x28] sm:$0xf]
        %v427 = vld [vmem:[%s350 + $0x2c] sm:$0xf]
        %v428 = vld [vmem:[%s350 + $0x30] sm:$0xf]
        %v429 = vld [vmem:[%s350 + $0x34] sm:$0xf]
        %v430 = vld [vmem:[%s350 + $0x38] sm:$0xf]
        %v431 = vld [vmem:[%s350 + $0x3c] sm:$0xf]
        %v448 = vunpack.c.l.b16 %v400
        %v449 = vunpack.c.l.b16 %v401
        %v450 = vunpack.c.l.b16 %v402
        %v451 = vunpack.c.l.b16 %v403
        %v452 = vunpack.c.l.b16 %v404
        %v453 = vunpack.c.l.b16 %v405
        %v454 = vunpack.c.l.b16 %v406
        %v455 = vunpack.c.l.b16 %v407
        %v456 = vunpack.c.l.b16 %v408
        %v457 = vunpack.c.l.b16 %v409
        %v458 = vunpack.c.l.b16 %v410
        %v459 = vunpack.c.l.b16 %v411
        %v460 = vunpack.c.l.b16 %v412
        %v461 = vunpack.c.l.b16 %v413
        %v462 = vunpack.c.l.b16 %v414
        %v463 = vunpack.c.l.b16 %v415
        %v464 = vpack.c.b16 %v449, %v448
        %v465 = vpack.c.b16 %v451, %v450
        %v466 = vpack.c.b16 %v453, %v452
        %v467 = vpack.c.b16 %v455, %v454
        %v468 = vpack.c.b16 %v457, %v456
        %v469 = vpack.c.b16 %v459, %v458
        %v470 = vpack.c.b16 %v461, %v460
        %v471 = vpack.c.b16 %v463, %v462
        %v496 = vunpack.c.l.b16 %v416
        %v497 = vunpack.c.l.b16 %v417
        %v498 = vunpack.c.l.b16 %v418
        %v499 = vunpack.c.l.b16 %v419
        %v500 = vunpack.c.l.b16 %v420
        %v501 = vunpack.c.l.b16 %v421
        %v502 = vunpack.c.l.b16 %v422
        %v503 = vunpack.c.l.b16 %v423
        %v504 = vunpack.c.l.b16 %v424
        %v505 = vunpack.c.l.b16 %v425
        %v506 = vunpack.c.l.b16 %v426
        %v507 = vunpack.c.l.b16 %v427
        %v508 = vunpack.c.l.b16 %v428
        %v509 = vunpack.c.l.b16 %v429
        %v510 = vunpack.c.l.b16 %v430
        %v511 = vunpack.c.l.b16 %v431
        %v512 = vpack.c.b16 %v497, %v496
        %v513 = vpack.c.b16 %v499, %v498
        %v514 = vpack.c.b16 %v501, %v500
        %v515 = vpack.c.b16 %v503, %v502
        %v516 = vpack.c.b16 %v505, %v504
        %v517 = vpack.c.b16 %v507, %v506
        %v518 = vpack.c.b16 %v509, %v508
        %v519 = vpack.c.b16 %v511, %v510
        %528 = vmatpush.bf16.msra.mxu0 %v519
        %529 = vmatpush.bf16.msra.mxu0 %v518
        %530 = vmatpush.bf16.msra.mxu0 %v517
        %531 = vmatpush.bf16.msra.mxu0 %v516
        %532 = vmatpush.bf16.msra.mxu0 %v515
        %533 = vmatpush.bf16.msra.mxu0 %v514
        %534 = vmatpush.bf16.msra.mxu0 %v513
        %535 = vmatpush.bf16.msra.mxu0 %v512
        %536 = vmatmul.bf16.gmra.mxu0 %v464
        %v537 = vpop.f32.mrf.mxu0
        %v538 = vadd.f32 0.0, %v537
        %v539 = vpop.f32.mrf.mxu0
        %v540 = vadd.f32 0.0, %v539
        %541 = vmatmul.bf16.gmra.mxu0 %v465
        %v542 = vpop.f32.mrf.mxu0
        %v543 = vadd.f32 0.0, %v542
        %v544 = vpop.f32.mrf.mxu0
        %v545 = vadd.f32 0.0, %v544
        %546 = vmatmul.bf16.gmra.mxu0 %v466
        %v547 = vpop.f32.mrf.mxu0
        %v548 = vadd.f32 0.0, %v547
        %v549 = vpop.f32.mrf.mxu0
        %v550 = vadd.f32 0.0, %v549
        %551 = vmatmul.bf16.gmra.mxu0 %v467
        %v552 = vpop.f32.mrf.mxu0
        %v553 = vadd.f32 0.0, %v552
        %v554 = vpop.f32.mrf.mxu0
        %v555 = vadd.f32 0.0, %v554
        %556 = vmatmul.bf16.gmra.mxu0 %v468
        %v557 = vpop.f32.mrf.mxu0
        %v558 = vadd.f32 0.0, %v557
        %v559 = vpop.f32.mrf.mxu0
        %v560 = vadd.f32 0.0, %v559
        %561 = vmatmul.bf16.gmra.mxu0 %v469
        %v562 = vpop.f32.mrf.mxu0
        %v563 = vadd.f32 0.0, %v562
        %v564 = vpop.f32.mrf.mxu0
        %v565 = vadd.f32 0.0, %v564
        %566 = vmatmul.bf16.gmra.mxu0 %v470
        %v567 = vpop.f32.mrf.mxu0
        %v568 = vadd.f32 0.0, %v567
        %v569 = vpop.f32.mrf.mxu0
        %v570 = vadd.f32 0.0, %v569
        %571 = vmatmul.bf16.gmra.mxu0 %v471
        %v572 = vpop.f32.mrf.mxu0
        %v573 = vadd.f32 0.0, %v572
        %v574 = vpop.f32.mrf.mxu0
        %v575 = vadd.f32 0.0, %v574
        %576 = vdwg.mxu0
        %v577 = vadd.f32 %v384, %v538
        %v578 = vadd.f32 %v385, %v540
        %v579 = vadd.f32 %v386, %v543
        %v580 = vadd.f32 %v387, %v545
        %v581 = vadd.f32 %v388, %v548
        %v582 = vadd.f32 %v389, %v550
        %v583 = vadd.f32 %v390, %v553
        %v584 = vadd.f32 %v391, %v555
        %v585 = vadd.f32 %v392, %v558
        %v586 = vadd.f32 %v393, %v560
        %v587 = vadd.f32 %v394, %v563
        %v588 = vadd.f32 %v395, %v565
        %v589 = vadd.f32 %v396, %v568
        %v590 = vadd.f32 %v397, %v570
        %v591 = vadd.f32 %v398, %v573
        %v592 = vadd.f32 %v399, %v575
        %593 = vst [vmem:[#allocation2] sm:$0xff] %v577
        %594 = vst [vmem:[#allocation2 + $0x8] sm:$0xff] %v578
        %595 = vst [vmem:[#allocation2 + $0x10] sm:$0xff] %v579
        %596 = vst [vmem:[#allocation2 + $0x18] sm:$0xff] %v580
        %597 = vst [vmem:[#allocation2 + $0x20] sm:$0xff] %v581
        %598 = vst [vmem:[#allocation2 + $0x28] sm:$0xff] %v582
        %599 = vst [vmem:[#allocation2 + $0x30] sm:$0xff] %v583
        %600 = vst [vmem:[#allocation2 + $0x38] sm:$0xff] %v584
        %601 = vst [vmem:[#allocation2 + $0x40] sm:$0xff] %v585
        %602 = vst [vmem:[#allocation2 + $0x48] sm:$0xff] %v586
        %603 = vst [vmem:[#allocation2 + $0x50] sm:$0xff] %v587
        %604 = vst [vmem:[#allocation2 + $0x58] sm:$0xff] %v588
        %605 = vst [vmem:[#allocation2 + $0x60] sm:$0xff] %v589
        %606 = vst [vmem:[#allocation2 + $0x68] sm:$0xff] %v590
        %607 = vst [vmem:[#allocation2 + $0x70] sm:$0xff] %v591
        %608 = vst [vmem:[#allocation2 + $0x78] sm:$0xff] %v592
        %p609 = scmp.eq.s32.totalorder %s20, 1
        // Predicated region
        $region82: #{gnn_conv_forward.5} parent=72 // pred_check
          %p610 = pneg %p609
        $region83: #{gnn_conv_forward.5} parent=72 // pred_check_branch
          %612 = sbr.rel (%p610) target = $region85
        $region84: #{gnn_conv_forward.5} parent=72 // pred_region
          %v613 = vld [vmem:[#allocation2] sm:$0xff]
          %v614 = vld [vmem:[#allocation2 + $0x8] sm:$0xff]
          %v615 = vld [vmem:[#allocation2 + $0x10] sm:$0xff]
          %v616 = vld [vmem:[#allocation2 + $0x18] sm:$0xff]
          %v617 = vld [vmem:[#allocation2 + $0x20] sm:$0xff]
          %v618 = vld [vmem:[#allocation2 + $0x28] sm:$0xff]
          %v619 = vld [vmem:[#allocation2 + $0x30] sm:$0xff]
          %v620 = vld [vmem:[#allocation2 + $0x38] sm:$0xff]
          %v621 = vld [vmem:[#allocation2 + $0x40] sm:$0xff]
          %v622 = vld [vmem:[#allocation2 + $0x48] sm:$0xff]
          %v623 = vld [vmem:[#allocation2 + $0x50] sm:$0xff]
          %v624 = vld [vmem:[#allocation2 + $0x58] sm:$0xff]
          %v625 = vld [vmem:[#allocation2 + $0x60] sm:$0xff]
          %v626 = vld [vmem:[#allocation2 + $0x68] sm:$0xff]
          %v627 = vld [vmem:[#allocation2 + $0x70] sm:$0xff]
          %v628 = vld [vmem:[#allocation2 + $0x78] sm:$0xff]
          %v629 = vld [vmem:[%s356] sm:$0xff]
          %v630 = vld [vmem:[%s356 + $0x8] sm:$0xff]
          %v631 = vld [vmem:[%s356 + $0x10] sm:$0xff]
          %v632 = vld [vmem:[%s356 + $0x18] sm:$0xff]
          %v633 = vld [vmem:[%s356 + $0x20] sm:$0xff]
          %v634 = vld [vmem:[%s356 + $0x28] sm:$0xff]
          %v635 = vld [vmem:[%s356 + $0x30] sm:$0xff]
          %v636 = vld [vmem:[%s356 + $0x38] sm:$0xff]
          %v637 = vld [vmem:[%s356 + $0x40] sm:$0xff]
          %v638 = vld [vmem:[%s356 + $0x48] sm:$0xff]
          %v639 = vld [vmem:[%s356 + $0x50] sm:$0xff]
          %v640 = vld [vmem:[%s356 + $0x58] sm:$0xff]
          %v641 = vld [vmem:[%s356 + $0x60] sm:$0xff]
          %v642 = vld [vmem:[%s356 + $0x68] sm:$0xff]
          %v643 = vld [vmem:[%s356 + $0x70] sm:$0xff]
          %v644 = vld [vmem:[%s356 + $0x78] sm:$0xff]
          %646 = vset.pattern.permute.xlu0 0
          %647 = vperm.xlu0 %646, %v629
          %v648 = vpop.permute.xlu0 %647
          %651 = vset.pattern.permute.xlu0 0
          %652 = vperm.xlu0 %651, %v630
          %v653 = vpop.permute.xlu0 %652
          %656 = vset.pattern.permute.xlu0 0
          %657 = vperm.xlu0 %656, %v631
          %v658 = vpop.permute.xlu0 %657
          %661 = vset.pattern.permute.xlu0 0
          %662 = vperm.xlu0 %661, %v632
          %v663 = vpop.permute.xlu0 %662
          %666 = vset.pattern.permute.xlu0 0
          %667 = vperm.xlu0 %666, %v633
          %v668 = vpop.permute.xlu0 %667
          %671 = vset.pattern.permute.xlu0 0
          %672 = vperm.xlu0 %671, %v634
          %v673 = vpop.permute.xlu0 %672
          %676 = vset.pattern.permute.xlu0 0
          %677 = vperm.xlu0 %676, %v635
          %v678 = vpop.permute.xlu0 %677
          %681 = vset.pattern.permute.xlu0 0
          %682 = vperm.xlu0 %681, %v636
          %v683 = vpop.permute.xlu0 %682
          %686 = vset.pattern.permute.xlu0 0
          %687 = vperm.xlu0 %686, %v637
          %v688 = vpop.permute.xlu0 %687
          %691 = vset.pattern.permute.xlu0 0
          %692 = vperm.xlu0 %691, %v638
          %v693 = vpop.permute.xlu0 %692
          %696 = vset.pattern.permute.xlu0 0
          %697 = vperm.xlu0 %696, %v639
          %v698 = vpop.permute.xlu0 %697
          %701 = vset.pattern.permute.xlu0 0
          %702 = vperm.xlu0 %701, %v640
          %v703 = vpop.permute.xlu0 %702
          %706 = vset.pattern.permute.xlu0 0
          %707 = vperm.xlu0 %706, %v641
          %v708 = vpop.permute.xlu0 %707
          %711 = vset.pattern.permute.xlu0 0
          %712 = vperm.xlu0 %711, %v642
          %v713 = vpop.permute.xlu0 %712
          %716 = vset.pattern.permute.xlu0 0
          %717 = vperm.xlu0 %716, %v643
          %v718 = vpop.permute.xlu0 %717
          %721 = vset.pattern.permute.xlu0 0
          %722 = vperm.xlu0 %721, %v644
          %v723 = vpop.permute.xlu0 %722
          %v725 = vmul.f32 %v613, %v648
          %v726 = vmul.f32 %v614, %v653
          %v727 = vmul.f32 %v615, %v658
          %v728 = vmul.f32 %v616, %v663
          %v729 = vmul.f32 %v617, %v668
          %v730 = vmul.f32 %v618, %v673
          %v731 = vmul.f32 %v619, %v678
          %v732 = vmul.f32 %v620, %v683
          %v733 = vmul.f32 %v621, %v688
          %v734 = vmul.f32 %v622, %v693
          %v735 = vmul.f32 %v623, %v698
          %v736 = vmul.f32 %v624, %v703
          %v737 = vmul.f32 %v625, %v708
          %v738 = vmul.f32 %v626, %v713
          %v739 = vmul.f32 %v627, %v718
          %v740 = vmul.f32 %v628, %v723
          %v741 = vld [vmem:[%s3] sm:$0x1]
          %v743 = vperm.slane %v741, 0
          %v745 = vadd.f32 %v725, %v743
          %v746 = vadd.f32 %v726, %v743
          %v747 = vadd.f32 %v727, %v743
          %v748 = vadd.f32 %v728, %v743
          %v749 = vadd.f32 %v729, %v743
          %v750 = vadd.f32 %v730, %v743
          %v751 = vadd.f32 %v731, %v743
          %v752 = vadd.f32 %v732, %v743
          %v753 = vadd.f32 %v733, %v743
          %v754 = vadd.f32 %v734, %v743
          %v755 = vadd.f32 %v735, %v743
          %v756 = vadd.f32 %v736, %v743
          %v757 = vadd.f32 %v737, %v743
          %v758 = vadd.f32 %v738, %v743
          %v759 = vadd.f32 %v739, %v743
          %v760 = vadd.f32 %v740, %v743
          %v761 = vmax.f32 %v745, 0.0
          %v762 = vmax.f32 %v746, 0.0
          %v763 = vmax.f32 %v747, 0.0
          %v764 = vmax.f32 %v748, 0.0
          %v765 = vmax.f32 %v749, 0.0
          %v766 = vmax.f32 %v750, 0.0
          %v767 = vmax.f32 %v751, 0.0
          %v768 = vmax.f32 %v752, 0.0
          %v769 = vmax.f32 %v753, 0.0
          %v770 = vmax.f32 %v754, 0.0
          %v771 = vmax.f32 %v755, 0.0
          %v772 = vmax.f32 %v756, 0.0
          %v773 = vmax.f32 %v757, 0.0
          %v774 = vmax.f32 %v758, 0.0
          %v775 = vmax.f32 %v759, 0.0
          %v776 = vmax.f32 %v760, 0.0
          %v777 = vpack.c.bf16 %v761, %v761
          %v778 = vpack.c.bf16 %v762, %v762
          %v779 = vpack.c.bf16 %v763, %v763
          %v780 = vpack.c.bf16 %v764, %v764
          %v781 = vpack.c.bf16 %v765, %v765
          %v782 = vpack.c.bf16 %v766, %v766
          %v783 = vpack.c.bf16 %v767, %v767
          %v784 = vpack.c.bf16 %v768, %v768
          %v785 = vpack.c.bf16 %v769, %v769
          %v786 = vpack.c.bf16 %v770, %v770
          %v787 = vpack.c.bf16 %v771, %v771
          %v788 = vpack.c.bf16 %v772, %v772
          %v789 = vpack.c.bf16 %v773, %v773
          %v790 = vpack.c.bf16 %v774, %v774
          %v791 = vpack.c.bf16 %v775, %v775
          %v792 = vpack.c.bf16 %v776, %v776
          %793 = vst [vmem:[%s362] sm:$0xf] %v777
          %794 = vst [vmem:[%s362 + $0x4] sm:$0xf] %v778
          %795 = vst [vmem:[%s362 + $0x8] sm:$0xf] %v779
          %796 = vst [vmem:[%s362 + $0xc] sm:$0xf] %v780
          %797 = vst [vmem:[%s362 + $0x10] sm:$0xf] %v781
          %798 = vst [vmem:[%s362 + $0x14] sm:$0xf] %v782
          %799 = vst [vmem:[%s362 + $0x18] sm:$0xf] %v783
          %800 = vst [vmem:[%s362 + $0x1c] sm:$0xf] %v784
          %801 = vst [vmem:[%s362 + $0x20] sm:$0xf] %v785
          %802 = vst [vmem:[%s362 + $0x24] sm:$0xf] %v786
          %803 = vst [vmem:[%s362 + $0x28] sm:$0xf] %v787
          %804 = vst [vmem:[%s362 + $0x2c] sm:$0xf] %v788
          %805 = vst [vmem:[%s362 + $0x30] sm:$0xf] %v789
          %806 = vst [vmem:[%s362 + $0x34] sm:$0xf] %v790
          %807 = vst [vmem:[%s362 + $0x38] sm:$0xf] %v791
          %808 = vst [vmem:[%s362 + $0x3c] sm:$0xf] %v792
        $region85: #{gnn_conv_forward.5} parent=72 // pred_fallthru
          _
        %s809 = smul.u32 16, %s19
        %p810 = scmp.lt.s32.totalorder %s809, 31
        %s811 = scalar_select %p810, %s809, 31
        %s812 = smul.addr %s811, 4
        %s813 = scalar_lea.vmem %s4, %s812
        // Predicated region
        $region86: #{gnn_conv_forward.5} parent=72 // pred_check
          %p814 = pneg %p146
        $region87: #{gnn_conv_forward.5} parent=72 // pred_check_branch
          %816 = sbr.rel (%p814) target = $region89
        $region88: #{gnn_conv_forward.5} parent=72 // pred_region
          %s817 = smul.u32 16, %s19
        $region89: #{gnn_conv_forward.5} parent=72 // pred_fallthru
          _
      $region73: #{gnn_conv_forward.5} parent=5 // pred_fallthru
        _
      %p818 = scmp.le.s32.totalorder 2, %s10
      // Predicated region
      $region90: #{gnn_conv_forward.5} parent=5 // pred_check
        %p819 = pneg %p818
      $region91: #{gnn_conv_forward.5} parent=5 // pred_check_branch
        %821 = sbr.rel (%p819) target = $region93
      $region92: #{gnn_conv_forward.5} parent=5 // pred_region
        %s822 = ssub.s32 %s10, 2
        // Predicated region
        $region94: #{gnn_conv_forward.5} parent=92 // pred_check
          %p823 = pneg %p152
        $region95: #{gnn_conv_forward.5} parent=92 // pred_check_branch
          %825 = sbr.rel (%p823) target = $region97
        $region96: #{gnn_conv_forward.5} parent=92 // pred_region
          %s826 = smul.u32 16, %s21
          %p827 = scmp.lt.s32.totalorder %s826, 31
          %s828 = scalar_select %p827, %s826, 31
          %s829 = smul.addr %s828, 4
          %s830 = scalar_lea.vmem %s4, %s829
        $region97: #{gnn_conv_forward.5} parent=92 // pred_fallthru
          _
      $region93: #{gnn_conv_forward.5} parent=5 // pred_fallthru
        _
    $region6: #{gnn_conv_forward.5} parent=1 // loop_footer
      %s14 = sadd.s32 1, %s10
    $region7: #{gnn_conv_forward.5} parent=1 // loop_footer_branch
      %9 = sbr.rel target = $region3
    $region8: #{gnn_conv_forward.5} parent=1 // loop_exit
      _

// kernel: gnn_conv_forward.6
$region0: #{gnn_conv_forward.6}
  #allocation0 [shape = 'u32[]', space=smem, size = 0x4, offset = 0x4, fixed_abs, tag = 'smem constant byte address 0x4 - core index']
  #allocation1 [shape = 'u32[72,128]{1,0:T(1,128)}', space=vmem, size = 0x9000, scoped, tag = 'internal scratch']
  %s0 = inlined_call_operand.vmem [shape: bf16[256,128], index: 0, kind: input, shape index: {}]
  %s1 = inlined_call_operand.vmem [shape: bf16[128,128], index: 1, kind: input, shape index: {}]
  %s2 = inlined_call_operand.vmem [shape: f32[256,1], index: 2, kind: input, shape index: {}]
  %s3 = inlined_call_operand.vmem [shape: bf16[256,128], index: 3, kind: output, shape index: {}]
  %s4 = sld [smem:[#allocation0]]
  $region45: #{gnn_conv_forward.6} parent=0
    _
  %s6 = ssub.s32 1, %s4
  %s7 = scalar_select 0, %s6, %s4
  loop: start=0, step=1, limit=4
  $region2: #{gnn_conv_forward.6} parent=0 // loop_pre_header
    _
  $region3: #{gnn_conv_forward.6} parent=0 // loop_header
    %s9 = sphi 0, %s13
    %p10 = scmp.ge.s32.totalorder %s9, 4
    %s19 = sphi 0, %s21
    %s22 = sphi 0, %s19
    %s23 = sphi 0, %s22
    %s39 = sphi 0, %s23
    %s43 = sphi 0, %s43
    %s45 = sphi 0, %s43
    %s46 = sphi 0, %s45
    %s60 = sphi 0, %s46
    %s66 = sphi 0, %s68
    %s69 = sphi 0, %s66
    %s70 = sphi 0, %s69
    %s86 = sphi 0, %s70
    %s92 = sphi 0, %s94
    %s95 = sphi 0, %s92
    %s96 = sphi 0, %s95
    %s112 = sphi 0, %s96
  $region4: #{gnn_conv_forward.6} parent=0 // loop_header_branch
    %12 = sbr.rel (%p10) target = $region8
  $region5: #{gnn_conv_forward.6} parent=0 // loop_body
    %s14 = ssub.s32 %s9, 1
    %s15 = ssub.s32 %s9, 2
    %s16 = sadd.s32 %s9, 1
    %s17 = ssub.s32 %s9, %s16
    %p18 = scmp.eq.s32.totalorder %s17, 0
    %s20 = sadd.s32 %s19, 1
    %s21 = scalar_select %p18, %s19, %s20
    %p24 = pneg %p18
    %p25 = scmp.eq.s32.totalorder %s9, 1
    %p26 = por %p24, %p25
    %p27 = scmp.ne.s32.totalorder %s19, %s22
    %p28 = scmp.eq.s32.totalorder %s9, 0
    %p29 = por %p27, %p28
    %p30 = scmp.ne.s32.totalorder %s19, %s22
    %p31 = scmp.eq.s32.totalorder %s14, 1
    %p32 = por %p30, %p31
    %p33 = scmp.ne.s32.totalorder %s22, %s23
    %p34 = scmp.eq.s32.totalorder %s14, 0
    %p35 = por %p33, %p34
    %p36 = scmp.ne.s32.totalorder %s22, %s23
    %p37 = scmp.eq.s32.totalorder %s15, 1
    %p38 = por %p36, %p37
    %p40 = scmp.ne.s32.totalorder %s23, %s39
    %p41 = scmp.eq.s32.totalorder %s15, 0
    %p42 = por %p40, %p41
    %s44 = sadd.s32 %s43, 1
    %p47 = scmp.eq.s32.totalorder %s9, 1
    %p48 = scmp.ne.s32.totalorder %s43, %s45
    %p49 = scmp.eq.s32.totalorder %s9, 0
    %p50 = por %p48, %p49
    %p51 = scmp.ne.s32.totalorder %s43, %s45
    %p52 = scmp.eq.s32.totalorder %s14, 1
    %p53 = por %p51, %p52
    %p54 = scmp.ne.s32.totalorder %s45, %s46
    %p55 = scmp.eq.s32.totalorder %s14, 0
    %p56 = por %p54, %p55
    %p57 = scmp.ne.s32.totalorder %s45, %s46
    %p58 = scmp.eq.s32.totalorder %s15, 1
    %p59 = por %p57, %p58
    %p61 = scmp.ne.s32.totalorder %s46, %s60
    %p62 = scmp.eq.s32.totalorder %s15, 0
    %p63 = por %p61, %p62
    %s64 = ssub.s32 %s9, %s16
    %p65 = scmp.eq.s32.totalorder %s64, 0
    %s67 = sadd.s32 %s66, 1
    %s68 = scalar_select %p65, %s66, %s67
    %p71 = pneg %p65
    %p72 = scmp.eq.s32.totalorder %s9, 1
    %p73 = por %p71, %p72
    %p74 = scmp.ne.s32.totalorder %s66, %s69
    %p75 = scmp.eq.s32.totalorder %s9, 0
    %p76 = por %p74, %p75
    %p77 = scmp.ne.s32.totalorder %s66, %s69
    %p78 = scmp.eq.s32.totalorder %s14, 1
    %p79 = por %p77, %p78
    %p80 = scmp.ne.s32.totalorder %s69, %s70
    %p81 = scmp.eq.s32.totalorder %s14, 0
    %p82 = por %p80, %p81
    %p83 = scmp.ne.s32.totalorder %s69, %s70
    %p84 = scmp.eq.s32.totalorder %s15, 1
    %p85 = por %p83, %p84
    %p87 = scmp.ne.s32.totalorder %s70, %s86
    %p88 = scmp.eq.s32.totalorder %s15, 0
    %p89 = por %p87, %p88
    %s90 = ssub.s32 %s9, %s16
    %p91 = scmp.eq.s32.totalorder %s90, 0
    %s93 = sadd.s32 %s92, 1
    %s94 = scalar_select %p91, %s92, %s93
    %p97 = pneg %p91
    %p98 = scmp.eq.s32.totalorder %s9, 1
    %p99 = por %p97, %p98
    %p100 = scmp.ne.s32.totalorder %s92, %s95
    %p101 = scmp.eq.s32.totalorder %s9, 0
    %p102 = por %p100, %p101
    %p103 = scmp.ne.s32.totalorder %s92, %s95
    %p104 = scmp.eq.s32.totalorder %s14, 1
    %p105 = por %p103, %p104
    %p106 = scmp.ne.s32.totalorder %s95, %s96
    %p107 = scmp.eq.s32.totalorder %s14, 0
    %p108 = por %p106, %p107
    %p109 = scmp.ne.s32.totalorder %s95, %s96
    %p110 = scmp.eq.s32.totalorder %s15, 1
    %p111 = por %p109, %p110
    %p113 = scmp.ne.s32.totalorder %s96, %s112
    %p114 = scmp.eq.s32.totalorder %s15, 0
    %p115 = por %p113, %p114
    %p116 = scmp.le.s32.totalorder 1, %s9
    %p117 = scmp.lt.s32.totalorder %s9, 3
    %p118 = pnand %p116, %p117
    %p119 = pneg %p118
    // Predicated region
    $region9: #{gnn_conv_forward.6} parent=5 // pred_check
      _
    $region10: #{gnn_conv_forward.6} parent=5 // pred_check_branch
      %121 = sbr.rel (%p118) target = $region12
    $region11: #{gnn_conv_forward.6} parent=5 // pred_region
      %s122 = ssub.s32 %s9, 1
      // Predicated region
      $region13: #{gnn_conv_forward.6} parent=11 // pred_check
        %p123 = pneg %p56
      $region14: #{gnn_conv_forward.6} parent=11 // pred_check_branch
        %125 = sbr.rel (%p123) target = $region16
      $region15: #{gnn_conv_forward.6} parent=11 // pred_region
        _
      $region16: #{gnn_conv_forward.6} parent=11 // pred_fallthru
        _
    $region12: #{gnn_conv_forward.6} parent=5 // pred_fallthru
      _
    %p126 = scmp.lt.s32.totalorder %s9, 2
    // Predicated region
    $region17: #{gnn_conv_forward.6} parent=5 // pred_check
      %p127 = pneg %p126
    $region18: #{gnn_conv_forward.6} parent=5 // pred_check_branch
      %129 = sbr.rel (%p127) target = $region20
    $region19: #{gnn_conv_forward.6} parent=5 // pred_region
      // Predicated region
      $region21: #{gnn_conv_forward.6} parent=19 // pred_check
        %p130 = pneg %p29
      $region22: #{gnn_conv_forward.6} parent=19 // pred_check_branch
        %132 = sbr.rel (%p130) target = $region24
      $region23: #{gnn_conv_forward.6} parent=19 // pred_region
        %s133 = smul.u32 16, %s9
        %p134 = scmp.lt.s32.totalorder %s133, 31
        %s135 = scalar_select %p134, %s133, 31
        %s136 = smul.addr %s135, 4
        %s137 = scalar_lea.vmem %s0, %s136
        %s138 = smul.u32 16, %s9
      $region24: #{gnn_conv_forward.6} parent=19 // pred_fallthru
        _
      // Predicated region
      $region25: #{gnn_conv_forward.6} parent=19 // pred_check
        %p139 = pneg %p76
      $region26: #{gnn_conv_forward.6} parent=19 // pred_check_branch
        %141 = sbr.rel (%p139) target = $region28
      $region27: #{gnn_conv_forward.6} parent=19 // pred_region
        %s142 = smul.u32 16, %s9
        %p143 = scmp.lt.s32.totalorder %s142, 31
        %s144 = scalar_select %p143, %s142, 31
        %s145 = smul.addr %s144, 8
        %s146 = scalar_lea.vmem %s2, %s145
        %s147 = smul.u32 16, %s9
      $region28: #{gnn_conv_forward.6} parent=19 // pred_fallthru
        _
    $region20: #{gnn_conv_forward.6} parent=5 // pred_fallthru
      _
    %p148 = scmp.le.s32.totalorder 1, %s9
    %p149 = scmp.lt.s32.totalorder %s9, 3
    %p150 = pnand %p148, %p149
    %p151 = pneg %p150
    // Predicated region
    $region29: #{gnn_conv_forward.6} parent=5 // pred_check
      _
    $region30: #{gnn_conv_forward.6} parent=5 // pred_check_branch
      %153 = sbr.rel (%p150) target = $region32
    $region31: #{gnn_conv_forward.6} parent=5 // pred_region
      %s154 = ssub.s32 %s9, 1
      %s155 = smul.u32 16, %s14
      %p156 = scmp.lt.s32.totalorder %s155, 31
      %s157 = scalar_select %p156, %s155, 31
      %s158 = smul.addr %s157, 4
      %s159 = scalar_lea.vmem %s0, %s158
      %p160 = pneg %p35
      %p161 = pneg %p32
      %p162 = pneg %p56
      %p163 = pneg %p53
      %s164 = smul.u32 16, %s14
      %p165 = scmp.lt.s32.totalorder %s164, 31
      %s166 = scalar_select %p165, %s164, 31
      %s167 = smul.addr %s166, 8
      %s168 = scalar_lea.vmem %s2, %s167
      %p169 = pneg %p82
      %p170 = pneg %p79
      %p171 = pneg %p108
      %p172 = pneg %p105
      %s173 = smul.u32 16, %s14
      %p174 = scmp.lt.s32.totalorder %s173, 31
      %s175 = scalar_select %p174, %s173, 31
      %s176 = smul.addr %s175, 4
      %s177 = scalar_lea.vmem %s3, %s176
      %s178 = smul.u32 16, %s14
      %p179 = scmp.lt.s32.totalorder %s178, 31
      %s180 = scalar_select %p179, %s178, 31
      %s181 = smul.addr %s180, 4
      %s182 = scalar_lea.vmem %s0, %s181
      %s183 = smul.u32 16, %s14
      %s184 = smul.u32 16, %s14
      %p185 = scmp.lt.s32.totalorder %s184, 31
      %s186 = scalar_select %p185, %s184, 31
      %s187 = smul.addr %s186, 8
      %s188 = scalar_lea.vmem %s2, %s187
      %s189 = smul.u32 16, %s14
      %s190 = smul.u32 16, %s14
      %p191 = scmp.lt.s32.totalorder %s190, 31
      %s192 = scalar_select %p191, %s190, 31
      %s193 = smul.addr %s192, 4
      %s194 = scalar_lea.vmem %s3, %s193
      %s195 = smul.u32 16, %s14
      %v196 = vld [vmem:[%s182] sm:$0xf]
      %v197 = vld [vmem:[%s182 + $0x4] sm:$0xf]
      %v198 = vld [vmem:[%s182 + $0x8] sm:$0xf]
      %v199 = vld [vmem:[%s182 + $0xc] sm:$0xf]
      %v200 = vld [vmem:[%s182 + $0x10] sm:$0xf]
      %v201 = vld [vmem:[%s182 + $0x14] sm:$0xf]
      %v202 = vld [vmem:[%s182 + $0x18] sm:$0xf]
      %v203 = vld [vmem:[%s182 + $0x1c] sm:$0xf]
      %v204 = vld [vmem:[%s182 + $0x20] sm:$0xf]
      %v205 = vld [vmem:[%s182 + $0x24] sm:$0xf]
      %v206 = vld [vmem:[%s182 + $0x28] sm:$0xf]
      %v207 = vld [vmem:[%s182 + $0x2c] sm:$0xf]
      %v208 = vld [vmem:[%s182 + $0x30] sm:$0xf]
      %v209 = vld [vmem:[%s182 + $0x34] sm:$0xf]
      %v210 = vld [vmem:[%s182 + $0x38] sm:$0xf]
      %v211 = vld [vmem:[%s182 + $0x3c] sm:$0xf]
      %v212 = vld [vmem:[%s1] sm:$0xf]
      %v213 = vld [vmem:[%s1 + $0x4] sm:$0xf]
      %v214 = vld [vmem:[%s1 + $0x8] sm:$0xf]
      %v215 = vld [vmem:[%s1 + $0xc] sm:$0xf]
      %v216 = vld [vmem:[%s1 + $0x10] sm:$0xf]
      %v217 = vld [vmem:[%s1 + $0x14] sm:$0xf]
      %v218 = vld [vmem:[%s1 + $0x18] sm:$0xf]
      %v219 = vld [vmem:[%s1 + $0x1c] sm:$0xf]
      %v220 = vld [vmem:[%s1 + $0x20] sm:$0xf]
      %v221 = vld [vmem:[%s1 + $0x24] sm:$0xf]
      %v222 = vld [vmem:[%s1 + $0x28] sm:$0xf]
      %v223 = vld [vmem:[%s1 + $0x2c] sm:$0xf]
      %v224 = vld [vmem:[%s1 + $0x30] sm:$0xf]
      %v225 = vld [vmem:[%s1 + $0x34] sm:$0xf]
      %v226 = vld [vmem:[%s1 + $0x38] sm:$0xf]
      %v227 = vld [vmem:[%s1 + $0x3c] sm:$0xf]
      %v244 = vunpack.c.l.b16 %v196
      %v245 = vunpack.c.l.b16 %v197
      %v246 = vunpack.c.l.b16 %v198
      %v247 = vunpack.c.l.b16 %v199
      %v248 = vunpack.c.l.b16 %v200
      %v249 = vunpack.c.l.b16 %v201
      %v250 = vunpack.c.l.b16 %v202
      %v251 = vunpack.c.l.b16 %v203
      %v252 = vunpack.c.l.b16 %v204
      %v253 = vunpack.c.l.b16 %v205
      %v254 = vunpack.c.l.b16 %v206
      %v255 = vunpack.c.l.b16 %v207
      %v256 = vunpack.c.l.b16 %v208
      %v257 = vunpack.c.l.b16 %v209
      %v258 = vunpack.c.l.b16 %v210
      %v259 = vunpack.c.l.b16 %v211
      %v260 = vpack.c.b16 %v245, %v244
      %v261 = vpack.c.b16 %v247, %v246
      %v262 = vpack.c.b16 %v249, %v248
      %v263 = vpack.c.b16 %v251, %v250
      %v264 = vpack.c.b16 %v253, %v252
      %v265 = vpack.c.b16 %v255, %v254
      %v266 = vpack.c.b16 %v257, %v256
      %v267 = vpack.c.b16 %v259, %v258
      %v292 = vunpack.c.l.b16 %v212
      %v293 = vunpack.c.l.b16 %v213
      %v294 = vunpack.c.l.b16 %v214
      %v295 = vunpack.c.l.b16 %v215
      %v296 = vunpack.c.l.b16 %v216
      %v297 = vunpack.c.l.b16 %v217
      %v298 = vunpack.c.l.b16 %v218
      %v299 = vunpack.c.l.b16 %v219
      %v300 = vunpack.c.l.b16 %v220
      %v301 = vunpack.c.l.b16 %v221
      %v302 = vunpack.c.l.b16 %v222
      %v303 = vunpack.c.l.b16 %v223
      %v304 = vunpack.c.l.b16 %v224
      %v305 = vunpack.c.l.b16 %v225
      %v306 = vunpack.c.l.b16 %v226
      %v307 = vunpack.c.l.b16 %v227
      %v308 = vpack.c.b16 %v293, %v292
      %v309 = vpack.c.b16 %v295, %v294
      %v310 = vpack.c.b16 %v297, %v296
      %v311 = vpack.c.b16 %v299, %v298
      %v312 = vpack.c.b16 %v301, %v300
      %v313 = vpack.c.b16 %v303, %v302
      %v314 = vpack.c.b16 %v305, %v304
      %v315 = vpack.c.b16 %v307, %v306
      %324 = vmatpush.bf16.msra.mxu0 %v315
      %325 = vmatpush.bf16.msra.mxu0 %v314
      %326 = vmatpush.bf16.msra.mxu0 %v313
      %327 = vmatpush.bf16.msra.mxu0 %v312
      %328 = vmatpush.bf16.msra.mxu0 %v311
      %329 = vmatpush.bf16.msra.mxu0 %v310
      %330 = vmatpush.bf16.msra.mxu0 %v309
      %331 = vmatpush.bf16.msra.mxu0 %v308
      %332 = vmatmul.bf16.gmra.mxu0 %v260
      %v333 = vpop.f32.mrf.mxu0
      %v334 = vadd.f32 0.0, %v333
      %v335 = vpop.f32.mrf.mxu0
      %v336 = vadd.f32 0.0, %v335
      %337 = vmatmul.bf16.gmra.mxu0 %v261
      %v338 = vpop.f32.mrf.mxu0
      %v339 = vadd.f32 0.0, %v338
      %v340 = vpop.f32.mrf.mxu0
      %v341 = vadd.f32 0.0, %v340
      %342 = vmatmul.bf16.gmra.mxu0 %v262
      %v343 = vpop.f32.mrf.mxu0
      %v344 = vadd.f32 0.0, %v343
      %v345 = vpop.f32.mrf.mxu0
      %v346 = vadd.f32 0.0, %v345
      %347 = vmatmul.bf16.gmra.mxu0 %v263
      %v348 = vpop.f32.mrf.mxu0
      %v349 = vadd.f32 0.0, %v348
      %v350 = vpop.f32.mrf.mxu0
      %v351 = vadd.f32 0.0, %v350
      %352 = vmatmul.bf16.gmra.mxu0 %v264
      %v353 = vpop.f32.mrf.mxu0
      %v354 = vadd.f32 0.0, %v353
      %v355 = vpop.f32.mrf.mxu0
      %v356 = vadd.f32 0.0, %v355
      %357 = vmatmul.bf16.gmra.mxu0 %v265
      %v358 = vpop.f32.mrf.mxu0
      %v359 = vadd.f32 0.0, %v358
      %v360 = vpop.f32.mrf.mxu0
      %v361 = vadd.f32 0.0, %v360
      %362 = vmatmul.bf16.gmra.mxu0 %v266
      %v363 = vpop.f32.mrf.mxu0
      %v364 = vadd.f32 0.0, %v363
      %v365 = vpop.f32.mrf.mxu0
      %v366 = vadd.f32 0.0, %v365
      %367 = vmatmul.bf16.gmra.mxu0 %v267
      %v368 = vpop.f32.mrf.mxu0
      %v369 = vadd.f32 0.0, %v368
      %v370 = vpop.f32.mrf.mxu0
      %v371 = vadd.f32 0.0, %v370
      %372 = vdwg.mxu0
      %v373 = vld [vmem:[%s188] sm:$0xff]
      %v374 = vld [vmem:[%s188 + $0x8] sm:$0xff]
      %v375 = vld [vmem:[%s188 + $0x10] sm:$0xff]
      %v376 = vld [vmem:[%s188 + $0x18] sm:$0xff]
      %v377 = vld [vmem:[%s188 + $0x20] sm:$0xff]
      %v378 = vld [vmem:[%s188 + $0x28] sm:$0xff]
      %v379 = vld [vmem:[%s188 + $0x30] sm:$0xff]
      %v380 = vld [vmem:[%s188 + $0x38] sm:$0xff]
      %v381 = vld [vmem:[%s188 + $0x40] sm:$0xff]
      %v382 = vld [vmem:[%s188 + $0x48] sm:$0xff]
      %v383 = vld [vmem:[%s188 + $0x50] sm:$0xff]
      %v384 = vld [vmem:[%s188 + $0x58] sm:$0xff]
      %v385 = vld [vmem:[%s188 + $0x60] sm:$0xff]
      %v386 = vld [vmem:[%s188 + $0x68] sm:$0xff]
      %v387 = vld [vmem:[%s188 + $0x70] sm:$0xff]
      %v388 = vld [vmem:[%s188 + $0x78] sm:$0xff]
      %390 = vset.pattern.permute.xlu0 0
      %391 = vperm.xlu0 %390, %v373
      %v392 = vpop.permute.xlu0 %391
      %395 = vset.pattern.permute.xlu0 0
      %396 = vperm.xlu0 %395, %v374
      %v397 = vpop.permute.xlu0 %396
      %400 = vset.pattern.permute.xlu0 0
      %401 = vperm.xlu0 %400, %v375
      %v402 = vpop.permute.xlu0 %401
      %405 = vset.pattern.permute.xlu0 0
      %406 = vperm.xlu0 %405, %v376
      %v407 = vpop.permute.xlu0 %406
      %410 = vset.pattern.permute.xlu0 0
      %411 = vperm.xlu0 %410, %v377
      %v412 = vpop.permute.xlu0 %411
      %415 = vset.pattern.permute.xlu0 0
      %416 = vperm.xlu0 %415, %v378
      %v417 = vpop.permute.xlu0 %416
      %420 = vset.pattern.permute.xlu0 0
      %421 = vperm.xlu0 %420, %v379
      %v422 = vpop.permute.xlu0 %421
      %425 = vset.pattern.permute.xlu0 0
      %426 = vperm.xlu0 %425, %v380
      %v427 = vpop.permute.xlu0 %426
      %430 = vset.pattern.permute.xlu0 0
      %431 = vperm.xlu0 %430, %v381
      %v432 = vpop.permute.xlu0 %431
      %435 = vset.pattern.permute.xlu0 0
      %436 = vperm.xlu0 %435, %v382
      %v437 = vpop.permute.xlu0 %436
      %440 = vset.pattern.permute.xlu0 0
      %441 = vperm.xlu0 %440, %v383
      %v442 = vpop.permute.xlu0 %441
      %445 = vset.pattern.permute.xlu0 0
      %446 = vperm.xlu0 %445, %v384
      %v447 = vpop.permute.xlu0 %446
      %450 = vset.pattern.permute.xlu0 0
      %451 = vperm.xlu0 %450, %v385
      %v452 = vpop.permute.xlu0 %451
      %455 = vset.pattern.permute.xlu0 0
      %456 = vperm.xlu0 %455, %v386
      %v457 = vpop.permute.xlu0 %456
      %460 = vset.pattern.permute.xlu0 0
      %461 = vperm.xlu0 %460, %v387
      %v462 = vpop.permute.xlu0 %461
      %465 = vset.pattern.permute.xlu0 0
      %466 = vperm.xlu0 %465, %v388
      %v467 = vpop.permute.xlu0 %466
      %v469 = vmul.f32 %v334, %v392
      %v470 = vmul.f32 %v336, %v397
      %v471 = vmul.f32 %v339, %v402
      %v472 = vmul.f32 %v341, %v407
      %v473 = vmul.f32 %v344, %v412
      %v474 = vmul.f32 %v346, %v417
      %v475 = vmul.f32 %v349, %v422
      %v476 = vmul.f32 %v351, %v427
      %v477 = vmul.f32 %v354, %v432
      %v478 = vmul.f32 %v356, %v437
      %v479 = vmul.f32 %v359, %v442
      %v480 = vmul.f32 %v361, %v447
      %v481 = vmul.f32 %v364, %v452
      %v482 = vmul.f32 %v366, %v457
      %v483 = vmul.f32 %v369, %v462
      %v484 = vmul.f32 %v371, %v467
      %v485 = vpack.c.bf16 %v469, %v469
      %v486 = vpack.c.bf16 %v470, %v470
      %v487 = vpack.c.bf16 %v471, %v471
      %v488 = vpack.c.bf16 %v472, %v472
      %v489 = vpack.c.bf16 %v473, %v473
      %v490 = vpack.c.bf16 %v474, %v474
      %v491 = vpack.c.bf16 %v475, %v475
      %v492 = vpack.c.bf16 %v476, %v476
      %v493 = vpack.c.bf16 %v477, %v477
      %v494 = vpack.c.bf16 %v478, %v478
      %v495 = vpack.c.bf16 %v479, %v479
      %v496 = vpack.c.bf16 %v480, %v480
      %v497 = vpack.c.bf16 %v481, %v481
      %v498 = vpack.c.bf16 %v482, %v482
      %v499 = vpack.c.bf16 %v483, %v483
      %v500 = vpack.c.bf16 %v484, %v484
      %501 = vst [vmem:[%s194] sm:$0xf] %v485
      %502 = vst [vmem:[%s194 + $0x4] sm:$0xf] %v486
      %503 = vst [vmem:[%s194 + $0x8] sm:$0xf] %v487
      %504 = vst [vmem:[%s194 + $0xc] sm:$0xf] %v488
      %505 = vst [vmem:[%s194 + $0x10] sm:$0xf] %v489
      %506 = vst [vmem:[%s194 + $0x14] sm:$0xf] %v490
      %507 = vst [vmem:[%s194 + $0x18] sm:$0xf] %v491
      %508 = vst [vmem:[%s194 + $0x1c] sm:$0xf] %v492
      %509 = vst [vmem:[%s194 + $0x20] sm:$0xf] %v493
      %510 = vst [vmem:[%s194 + $0x24] sm:$0xf] %v494
      %511 = vst [vmem:[%s194 + $0x28] sm:$0xf] %v495
      %512 = vst [vmem:[%s194 + $0x2c] sm:$0xf] %v496
      %513 = vst [vmem:[%s194 + $0x30] sm:$0xf] %v497
      %514 = vst [vmem:[%s194 + $0x34] sm:$0xf] %v498
      %515 = vst [vmem:[%s194 + $0x38] sm:$0xf] %v499
      %516 = vst [vmem:[%s194 + $0x3c] sm:$0xf] %v500
      %s517 = smul.u32 16, %s14
      %p518 = scmp.lt.s32.totalorder %s517, 31
      %s519 = scalar_select %p518, %s517, 31
      %s520 = smul.addr %s519, 4
      %s521 = scalar_lea.vmem %s3, %s520
      // Predicated region
      $region33: #{gnn_conv_forward.6} parent=31 // pred_check
        %p522 = pneg %p105
      $region34: #{gnn_conv_forward.6} parent=31 // pred_check_branch
        %524 = sbr.rel (%p522) target = $region36
      $region35: #{gnn_conv_forward.6} parent=31 // pred_region
        %s525 = smul.u32 16, %s14
      $region36: #{gnn_conv_forward.6} parent=31 // pred_fallthru
        _
    $region32: #{gnn_conv_forward.6} parent=5 // pred_fallthru
      _
    %p526 = scmp.le.s32.totalorder 2, %s9
    // Predicated region
    $region37: #{gnn_conv_forward.6} parent=5 // pred_check
      %p527 = pneg %p526
    $region38: #{gnn_conv_forward.6} parent=5 // pred_check_branch
      %529 = sbr.rel (%p527) target = $region40
    $region39: #{gnn_conv_forward.6} parent=5 // pred_region
      %s530 = ssub.s32 %s9, 2
      // Predicated region
      $region41: #{gnn_conv_forward.6} parent=39 // pred_check
        %p531 = pneg %p111
      $region42: #{gnn_conv_forward.6} parent=39 // pred_check_branch
        %533 = sbr.rel (%p531) target = $region44
      $region43: #{gnn_conv_forward.6} parent=39 // pred_region
        %s534 = smul.u32 16, %s15
        %p535 = scmp.lt.s32.totalorder %s534, 31
        %s536 = scalar_select %p535, %s534, 31
        %s537 = smul.addr %s536, 4
        %s538 = scalar_lea.vmem %s3, %s537
      $region44: #{gnn_conv_forward.6} parent=39 // pred_fallthru
        _
    $region40: #{gnn_conv_forward.6} parent=5 // pred_fallthru
      _
  $region6: #{gnn_conv_forward.6} parent=0 // loop_footer
    %s13 = sadd.s32 1, %s9
  $region7: #{gnn_conv_forward.6} parent=0 // loop_footer_branch
    %8 = sbr.rel target = $region3
  $region8: #{gnn_conv_forward.6} parent=0 // loop_exit
    _

// kernel: gnn_conv_forward.4
$region0: #{gnn_conv_forward.4}
  #allocation0 [shape = 'u32[]', space=smem, size = 0x4, offset = 0x4, fixed_abs, tag = 'smem constant byte address 0x4 - core index']
  #allocation1 [shape = 'u32[72,128]{1,0:T(1,128)}', space=vmem, size = 0x9000, scoped, tag = 'internal scratch']
  %s0 = inlined_call_operand.vmem [shape: bf16[256,16], index: 0, kind: input, shape index: {}]
  %s1 = inlined_call_operand.vmem [shape: bf16[16,128], index: 1, kind: input, shape index: {}]
  %s2 = inlined_call_operand.vmem [shape: f32[256,1], index: 2, kind: input, shape index: {}]
  %s3 = inlined_call_operand.vmem [shape: bf16[256,128], index: 3, kind: output, shape index: {}]
  %s4 = sld [smem:[#allocation0]]
  $region45: #{gnn_conv_forward.4} parent=0
    _
  %s6 = ssub.s32 1, %s4
  %s7 = scalar_select 0, %s6, %s4
  loop: start=0, step=1, limit=4
  $region2: #{gnn_conv_forward.4} parent=0 // loop_pre_header
    _
  $region3: #{gnn_conv_forward.4} parent=0 // loop_header
    %s9 = sphi 0, %s13
    %p10 = scmp.ge.s32.totalorder %s9, 4
    %s19 = sphi 0, %s21
    %s22 = sphi 0, %s19
    %s23 = sphi 0, %s22
    %s39 = sphi 0, %s23
    %s43 = sphi 0, %s43
    %s45 = sphi 0, %s43
    %s46 = sphi 0, %s45
    %s60 = sphi 0, %s46
    %s66 = sphi 0, %s68
    %s69 = sphi 0, %s66
    %s70 = sphi 0, %s69
    %s86 = sphi 0, %s70
    %s92 = sphi 0, %s94
    %s95 = sphi 0, %s92
    %s96 = sphi 0, %s95
    %s112 = sphi 0, %s96
  $region4: #{gnn_conv_forward.4} parent=0 // loop_header_branch
    %12 = sbr.rel (%p10) target = $region8
  $region5: #{gnn_conv_forward.4} parent=0 // loop_body
    %s14 = ssub.s32 %s9, 1
    %s15 = ssub.s32 %s9, 2
    %s16 = sadd.s32 %s9, 1
    %s17 = ssub.s32 %s9, %s16
    %p18 = scmp.eq.s32.totalorder %s17, 0
    %s20 = sadd.s32 %s19, 1
    %s21 = scalar_select %p18, %s19, %s20
    %p24 = pneg %p18
    %p25 = scmp.eq.s32.totalorder %s9, 1
    %p26 = por %p24, %p25
    %p27 = scmp.ne.s32.totalorder %s19, %s22
    %p28 = scmp.eq.s32.totalorder %s9, 0
    %p29 = por %p27, %p28
    %p30 = scmp.ne.s32.totalorder %s19, %s22
    %p31 = scmp.eq.s32.totalorder %s14, 1
    %p32 = por %p30, %p31
    %p33 = scmp.ne.s32.totalorder %s22, %s23
    %p34 = scmp.eq.s32.totalorder %s14, 0
    %p35 = por %p33, %p34
    %p36 = scmp.ne.s32.totalorder %s22, %s23
    %p37 = scmp.eq.s32.totalorder %s15, 1
    %p38 = por %p36, %p37
    %p40 = scmp.ne.s32.totalorder %s23, %s39
    %p41 = scmp.eq.s32.totalorder %s15, 0
    %p42 = por %p40, %p41
    %s44 = sadd.s32 %s43, 1
    %p47 = scmp.eq.s32.totalorder %s9, 1
    %p48 = scmp.ne.s32.totalorder %s43, %s45
    %p49 = scmp.eq.s32.totalorder %s9, 0
    %p50 = por %p48, %p49
    %p51 = scmp.ne.s32.totalorder %s43, %s45
    %p52 = scmp.eq.s32.totalorder %s14, 1
    %p53 = por %p51, %p52
    %p54 = scmp.ne.s32.totalorder %s45, %s46
    %p55 = scmp.eq.s32.totalorder %s14, 0
    %p56 = por %p54, %p55
    %p57 = scmp.ne.s32.totalorder %s45, %s46
    %p58 = scmp.eq.s32.totalorder %s15, 1
    %p59 = por %p57, %p58
    %p61 = scmp.ne.s32.totalorder %s46, %s60
    %p62 = scmp.eq.s32.totalorder %s15, 0
    %p63 = por %p61, %p62
    %s64 = ssub.s32 %s9, %s16
    %p65 = scmp.eq.s32.totalorder %s64, 0
    %s67 = sadd.s32 %s66, 1
    %s68 = scalar_select %p65, %s66, %s67
    %p71 = pneg %p65
    %p72 = scmp.eq.s32.totalorder %s9, 1
    %p73 = por %p71, %p72
    %p74 = scmp.ne.s32.totalorder %s66, %s69
    %p75 = scmp.eq.s32.totalorder %s9, 0
    %p76 = por %p74, %p75
    %p77 = scmp.ne.s32.totalorder %s66, %s69
    %p78 = scmp.eq.s32.totalorder %s14, 1
    %p79 = por %p77, %p78
    %p80 = scmp.ne.s32.totalorder %s69, %s70
    %p81 = scmp.eq.s32.totalorder %s14, 0
    %p82 = por %p80, %p81
    %p83 = scmp.ne.s32.totalorder %s69, %s70
    %p84 = scmp.eq.s32.totalorder %s15, 1
    %p85 = por %p83, %p84
    %p87 = scmp.ne.s32.totalorder %s70, %s86
    %p88 = scmp.eq.s32.totalorder %s15, 0
    %p89 = por %p87, %p88
    %s90 = ssub.s32 %s9, %s16
    %p91 = scmp.eq.s32.totalorder %s90, 0
    %s93 = sadd.s32 %s92, 1
    %s94 = scalar_select %p91, %s92, %s93
    %p97 = pneg %p91
    %p98 = scmp.eq.s32.totalorder %s9, 1
    %p99 = por %p97, %p98
    %p100 = scmp.ne.s32.totalorder %s92, %s95
    %p101 = scmp.eq.s32.totalorder %s9, 0
    %p102 = por %p100, %p101
    %p103 = scmp.ne.s32.totalorder %s92, %s95
    %p104 = scmp.eq.s32.totalorder %s14, 1
    %p105 = por %p103, %p104
    %p106 = scmp.ne.s32.totalorder %s95, %s96
    %p107 = scmp.eq.s32.totalorder %s14, 0
    %p108 = por %p106, %p107
    %p109 = scmp.ne.s32.totalorder %s95, %s96
    %p110 = scmp.eq.s32.totalorder %s15, 1
    %p111 = por %p109, %p110
    %p113 = scmp.ne.s32.totalorder %s96, %s112
    %p114 = scmp.eq.s32.totalorder %s15, 0
    %p115 = por %p113, %p114
    %p116 = scmp.le.s32.totalorder 1, %s9
    %p117 = scmp.lt.s32.totalorder %s9, 3
    %p118 = pnand %p116, %p117
    %p119 = pneg %p118
    // Predicated region
    $region9: #{gnn_conv_forward.4} parent=5 // pred_check
      _
    $region10: #{gnn_conv_forward.4} parent=5 // pred_check_branch
      %121 = sbr.rel (%p118) target = $region12
    $region11: #{gnn_conv_forward.4} parent=5 // pred_region
      %s122 = ssub.s32 %s9, 1
      // Predicated region
      $region13: #{gnn_conv_forward.4} parent=11 // pred_check
        %p123 = pneg %p56
      $region14: #{gnn_conv_forward.4} parent=11 // pred_check_branch
        %125 = sbr.rel (%p123) target = $region16
      $region15: #{gnn_conv_forward.4} parent=11 // pred_region
        _
      $region16: #{gnn_conv_forward.4} parent=11 // pred_fallthru
        _
    $region12: #{gnn_conv_forward.4} parent=5 // pred_fallthru
      _
    %p126 = scmp.lt.s32.totalorder %s9, 2
    // Predicated region
    $region17: #{gnn_conv_forward.4} parent=5 // pred_check
      %p127 = pneg %p126
    $region18: #{gnn_conv_forward.4} parent=5 // pred_check_branch
      %129 = sbr.rel (%p127) target = $region20
    $region19: #{gnn_conv_forward.4} parent=5 // pred_region
      // Predicated region
      $region21: #{gnn_conv_forward.4} parent=19 // pred_check
        %p130 = pneg %p29
      $region22: #{gnn_conv_forward.4} parent=19 // pred_check_branch
        %132 = sbr.rel (%p130) target = $region24
      $region23: #{gnn_conv_forward.4} parent=19 // pred_region
        %s133 = smul.u32 16, %s9
        %p134 = scmp.lt.s32.totalorder %s133, 31
        %s135 = scalar_select %p134, %s133, 31
        %s136 = smul.addr %s135, 4
        %s137 = scalar_lea.vmem %s0, %s136
        %s138 = smul.u32 16, %s9
      $region24: #{gnn_conv_forward.4} parent=19 // pred_fallthru
        _
      // Predicated region
      $region25: #{gnn_conv_forward.4} parent=19 // pred_check
        %p139 = pneg %p76
      $region26: #{gnn_conv_forward.4} parent=19 // pred_check_branch
        %141 = sbr.rel (%p139) target = $region28
      $region27: #{gnn_conv_forward.4} parent=19 // pred_region
        %s142 = smul.u32 16, %s9
        %p143 = scmp.lt.s32.totalorder %s142, 31
        %s144 = scalar_select %p143, %s142, 31
        %s145 = smul.addr %s144, 8
        %s146 = scalar_lea.vmem %s2, %s145
        %s147 = smul.u32 16, %s9
      $region28: #{gnn_conv_forward.4} parent=19 // pred_fallthru
        _
    $region20: #{gnn_conv_forward.4} parent=5 // pred_fallthru
      _
    %p148 = scmp.le.s32.totalorder 1, %s9
    %p149 = scmp.lt.s32.totalorder %s9, 3
    %p150 = pnand %p148, %p149
    %p151 = pneg %p150
    // Predicated region
    $region29: #{gnn_conv_forward.4} parent=5 // pred_check
      _
    $region30: #{gnn_conv_forward.4} parent=5 // pred_check_branch
      %153 = sbr.rel (%p150) target = $region32
    $region31: #{gnn_conv_forward.4} parent=5 // pred_region
      %s154 = ssub.s32 %s9, 1
      %s155 = smul.u32 16, %s14
      %p156 = scmp.lt.s32.totalorder %s155, 31
      %s157 = scalar_select %p156, %s155, 31
      %s158 = smul.addr %s157, 4
      %s159 = scalar_lea.vmem %s0, %s158
      %p160 = pneg %p35
      %p161 = pneg %p32
      %p162 = pneg %p56
      %p163 = pneg %p53
      %s164 = smul.u32 16, %s14
      %p165 = scmp.lt.s32.totalorder %s164, 31
      %s166 = scalar_select %p165, %s164, 31
      %s167 = smul.addr %s166, 8
      %s168 = scalar_lea.vmem %s2, %s167
      %p169 = pneg %p82
      %p170 = pneg %p79
      %p171 = pneg %p108
      %p172 = pneg %p105
      %s173 = smul.u32 16, %s14
      %p174 = scmp.lt.s32.totalorder %s173, 31
      %s175 = scalar_select %p174, %s173, 31
      %s176 = smul.addr %s175, 4
      %s177 = scalar_lea.vmem %s3, %s176
      %s178 = smul.u32 16, %s14
      %p179 = scmp.lt.s32.totalorder %s178, 31
      %s180 = scalar_select %p179, %s178, 31
      %s181 = smul.addr %s180, 4
      %s182 = scalar_lea.vmem %s0, %s181
      %s183 = smul.u32 16, %s14
      %s184 = smul.u32 16, %s14
      %p185 = scmp.lt.s32.totalorder %s184, 31
      %s186 = scalar_select %p185, %s184, 31
      %s187 = smul.addr %s186, 8
      %s188 = scalar_lea.vmem %s2, %s187
      %s189 = smul.u32 16, %s14
      %s190 = smul.u32 16, %s14
      %p191 = scmp.lt.s32.totalorder %s190, 31
      %s192 = scalar_select %p191, %s190, 31
      %s193 = smul.addr %s192, 4
      %s194 = scalar_lea.vmem %s3, %s193
      %s195 = smul.u32 16, %s14
      %v197 = vld [vmem:[%s182] sm:$0xf]
      %v198 = vld [vmem:[%s182 + $0x4] sm:$0xf]
      %v199 = vld [vmem:[%s182 + $0x8] sm:$0xf]
      %v200 = vld [vmem:[%s182 + $0xc] sm:$0xf]
      %v201 = vld [vmem:[%s182 + $0x10] sm:$0xf]
      %v202 = vld [vmem:[%s182 + $0x14] sm:$0xf]
      %v203 = vld [vmem:[%s182 + $0x18] sm:$0xf]
      %v204 = vld [vmem:[%s182 + $0x1c] sm:$0xf]
      %v205 = vld [vmem:[%s182 + $0x20] sm:$0xf]
      %v206 = vld [vmem:[%s182 + $0x24] sm:$0xf]
      %v207 = vld [vmem:[%s182 + $0x28] sm:$0xf]
      %v208 = vld [vmem:[%s182 + $0x2c] sm:$0xf]
      %v209 = vld [vmem:[%s182 + $0x30] sm:$0xf]
      %v210 = vld [vmem:[%s182 + $0x34] sm:$0xf]
      %v211 = vld [vmem:[%s182 + $0x38] sm:$0xf]
      %v212 = vld [vmem:[%s182 + $0x3c] sm:$0xf]
      %v213 = vld [vmem:[%s1] sm:$0xf]
      %v214 = vld [vmem:[%s1 + $0x4] sm:$0xf]
      %v231 = vunpack.c.l.b16 %v197
      %v232 = vunpack.c.l.b16 %v198
      %v233 = vunpack.c.l.b16 %v199
      %v234 = vunpack.c.l.b16 %v200
      %v235 = vunpack.c.l.b16 %v201
      %v236 = vunpack.c.l.b16 %v202
      %v237 = vunpack.c.l.b16 %v203
      %v238 = vunpack.c.l.b16 %v204
      %v239 = vunpack.c.l.b16 %v205
      %v240 = vunpack.c.l.b16 %v206
      %v241 = vunpack.c.l.b16 %v207
      %v242 = vunpack.c.l.b16 %v208
      %v243 = vunpack.c.l.b16 %v209
      %v244 = vunpack.c.l.b16 %v210
      %v245 = vunpack.c.l.b16 %v211
      %v246 = vunpack.c.l.b16 %v212
      %v247 = vpack.c.b16 %v232, %v231
      %v248 = vpack.c.b16 %v234, %v233
      %v249 = vpack.c.b16 %v236, %v235
      %v250 = vpack.c.b16 %v238, %v237
      %v251 = vpack.c.b16 %v240, %v239
      %v252 = vpack.c.b16 %v242, %v241
      %v253 = vpack.c.b16 %v244, %v243
      %v254 = vpack.c.b16 %v246, %v245
      %v257 = vunpack.c.l.b16 %v213
      %v258 = vunpack.c.l.b16 %v214
      %v259 = vpack.c.b16 %v258, %v257
      %vm261 = vcmask 130048
      %v263 = vsel %vm261, %v247, 0
      %v266 = vsel %vm261, %v248, 0
      %v269 = vsel %vm261, %v249, 0
      %v272 = vsel %vm261, %v250, 0
      %v275 = vsel %vm261, %v251, 0
      %v278 = vsel %vm261, %v252, 0
      %v281 = vsel %vm261, %v253, 0
      %v284 = vsel %vm261, %v254, 0
      %286 = vmatpush.bf16.msra.mxu0 0
      %287 = vmatpush.bf16.msra.mxu0 0
      %288 = vmatpush.bf16.msra.mxu0 0
      %289 = vmatpush.bf16.msra.mxu0 0
      %290 = vmatpush.bf16.msra.mxu0 0
      %291 = vmatpush.bf16.msra.mxu0 0
      %292 = vmatpush.bf16.msra.mxu0 0
      %293 = vmatpush.bf16.msra.mxu0 %v259
      %294 = vmatmul.bf16.gmra.mxu0 %v263
      %v295 = vpop.f32.mrf.mxu0
      %v296 = vadd.f32 0.0, %v295
      %v297 = vpop.f32.mrf.mxu0
      %v298 = vadd.f32 0.0, %v297
      %299 = vmatmul.bf16.gmra.mxu0 %v266
      %v300 = vpop.f32.mrf.mxu0
      %v301 = vadd.f32 0.0, %v300
      %v302 = vpop.f32.mrf.mxu0
      %v303 = vadd.f32 0.0, %v302
      %304 = vmatmul.bf16.gmra.mxu0 %v269
      %v305 = vpop.f32.mrf.mxu0
      %v306 = vadd.f32 0.0, %v305
      %v307 = vpop.f32.mrf.mxu0
      %v308 = vadd.f32 0.0, %v307
      %309 = vmatmul.bf16.gmra.mxu0 %v272
      %v310 = vpop.f32.mrf.mxu0
      %v311 = vadd.f32 0.0, %v310
      %v312 = vpop.f32.mrf.mxu0
      %v313 = vadd.f32 0.0, %v312
      %314 = vmatmul.bf16.gmra.mxu0 %v275
      %v315 = vpop.f32.mrf.mxu0
      %v316 = vadd.f32 0.0, %v315
      %v317 = vpop.f32.mrf.mxu0
      %v318 = vadd.f32 0.0, %v317
      %319 = vmatmul.bf16.gmra.mxu0 %v278
      %v320 = vpop.f32.mrf.mxu0
      %v321 = vadd.f32 0.0, %v320
      %v322 = vpop.f32.mrf.mxu0
      %v323 = vadd.f32 0.0, %v322
      %324 = vmatmul.bf16.gmra.mxu0 %v281
      %v325 = vpop.f32.mrf.mxu0
      %v326 = vadd.f32 0.0, %v325
      %v327 = vpop.f32.mrf.mxu0
      %v328 = vadd.f32 0.0, %v327
      %329 = vmatmul.bf16.gmra.mxu0 %v284
      %v330 = vpop.f32.mrf.mxu0
      %v331 = vadd.f32 0.0, %v330
      %v332 = vpop.f32.mrf.mxu0
      %v333 = vadd.f32 0.0, %v332
      %334 = vdwg.mxu0
      %v335 = vld [vmem:[%s188] sm:$0xff]
      %v336 = vld [vmem:[%s188 + $0x8] sm:$0xff]
      %v337 = vld [vmem:[%s188 + $0x10] sm:$0xff]
      %v338 = vld [vmem:[%s188 + $0x18] sm:$0xff]
      %v339 = vld [vmem:[%s188 + $0x20] sm:$0xff]
      %v340 = vld [vmem:[%s188 + $0x28] sm:$0xff]
      %v341 = vld [vmem:[%s188 + $0x30] sm:$0xff]
      %v342 = vld [vmem:[%s188 + $0x38] sm:$0xff]
      %v343 = vld [vmem:[%s188 + $0x40] sm:$0xff]
      %v344 = vld [vmem:[%s188 + $0x48] sm:$0xff]
      %v345 = vld [vmem:[%s188 + $0x50] sm:$0xff]
      %v346 = vld [vmem:[%s188 + $0x58] sm:$0xff]
      %v347 = vld [vmem:[%s188 + $0x60] sm:$0xff]
      %v348 = vld [vmem:[%s188 + $0x68] sm:$0xff]
      %v349 = vld [vmem:[%s188 + $0x70] sm:$0xff]
      %v350 = vld [vmem:[%s188 + $0x78] sm:$0xff]
      %352 = vset.pattern.permute.xlu0 0
      %353 = vperm.xlu0 %352, %v335
      %v354 = vpop.permute.xlu0 %353
      %357 = vset.pattern.permute.xlu0 0
      %358 = vperm.xlu0 %357, %v336
      %v359 = vpop.permute.xlu0 %358
      %362 = vset.pattern.permute.xlu0 0
      %363 = vperm.xlu0 %362, %v337
      %v364 = vpop.permute.xlu0 %363
      %367 = vset.pattern.permute.xlu0 0
      %368 = vperm.xlu0 %367, %v338
      %v369 = vpop.permute.xlu0 %368
      %372 = vset.pattern.permute.xlu0 0
      %373 = vperm.xlu0 %372, %v339
      %v374 = vpop.permute.xlu0 %373
      %377 = vset.pattern.permute.xlu0 0
      %378 = vperm.xlu0 %377, %v340
      %v379 = vpop.permute.xlu0 %378
      %382 = vset.pattern.permute.xlu0 0
      %383 = vperm.xlu0 %382, %v341
      %v384 = vpop.permute.xlu0 %383
      %387 = vset.pattern.permute.xlu0 0
      %388 = vperm.xlu0 %387, %v342
      %v389 = vpop.permute.xlu0 %388
      %392 = vset.pattern.permute.xlu0 0
      %393 = vperm.xlu0 %392, %v343
      %v394 = vpop.permute.xlu0 %393
      %397 = vset.pattern.permute.xlu0 0
      %398 = vperm.xlu0 %397, %v344
      %v399 = vpop.permute.xlu0 %398
      %402 = vset.pattern.permute.xlu0 0
      %403 = vperm.xlu0 %402, %v345
      %v404 = vpop.permute.xlu0 %403
      %407 = vset.pattern.permute.xlu0 0
      %408 = vperm.xlu0 %407, %v346
      %v409 = vpop.permute.xlu0 %408
      %412 = vset.pattern.permute.xlu0 0
      %413 = vperm.xlu0 %412, %v347
      %v414 = vpop.permute.xlu0 %413
      %417 = vset.pattern.permute.xlu0 0
      %418 = vperm.xlu0 %417, %v348
      %v419 = vpop.permute.xlu0 %418
      %422 = vset.pattern.permute.xlu0 0
      %423 = vperm.xlu0 %422, %v349
      %v424 = vpop.permute.xlu0 %423
      %427 = vset.pattern.permute.xlu0 0
      %428 = vperm.xlu0 %427, %v350
      %v429 = vpop.permute.xlu0 %428
      %v431 = vmul.f32 %v296, %v354
      %v432 = vmul.f32 %v298, %v359
      %v433 = vmul.f32 %v301, %v364
      %v434 = vmul.f32 %v303, %v369
      %v435 = vmul.f32 %v306, %v374
      %v436 = vmul.f32 %v308, %v379
      %v437 = vmul.f32 %v311, %v384
      %v438 = vmul.f32 %v313, %v389
      %v439 = vmul.f32 %v316, %v394
      %v440 = vmul.f32 %v318, %v399
      %v441 = vmul.f32 %v321, %v404
      %v442 = vmul.f32 %v323, %v409
      %v443 = vmul.f32 %v326, %v414
      %v444 = vmul.f32 %v328, %v419
      %v445 = vmul.f32 %v331, %v424
      %v446 = vmul.f32 %v333, %v429
      %v447 = vpack.c.bf16 %v431, %v431
      %v448 = vpack.c.bf16 %v432, %v432
      %v449 = vpack.c.bf16 %v433, %v433
      %v450 = vpack.c.bf16 %v434, %v434
      %v451 = vpack.c.bf16 %v435, %v435
      %v452 = vpack.c.bf16 %v436, %v436
      %v453 = vpack.c.bf16 %v437, %v437
      %v454 = vpack.c.bf16 %v438, %v438
      %v455 = vpack.c.bf16 %v439, %v439
      %v456 = vpack.c.bf16 %v440, %v440
      %v457 = vpack.c.bf16 %v441, %v441
      %v458 = vpack.c.bf16 %v442, %v442
      %v459 = vpack.c.bf16 %v443, %v443
      %v460 = vpack.c.bf16 %v444, %v444
      %v461 = vpack.c.bf16 %v445, %v445
      %v462 = vpack.c.bf16 %v446, %v446
      %463 = vst [vmem:[%s194] sm:$0xf] %v447
      %464 = vst [vmem:[%s194 + $0x4] sm:$0xf] %v448
      %465 = vst [vmem:[%s194 + $0x8] sm:$0xf] %v449
      %466 = vst [vmem:[%s194 + $0xc] sm:$0xf] %v450
      %467 = vst [vmem:[%s194 + $0x10] sm:$0xf] %v451
      %468 = vst [vmem:[%s194 + $0x14] sm:$0xf] %v452
      %469 = vst [vmem:[%s194 + $0x18] sm:$0xf] %v453
      %470 = vst [vmem:[%s194 + $0x1c] sm:$0xf] %v454
      %471 = vst [vmem:[%s194 + $0x20] sm:$0xf] %v455
      %472 = vst [vmem:[%s194 + $0x24] sm:$0xf] %v456
      %473 = vst [vmem:[%s194 + $0x28] sm:$0xf] %v457
      %474 = vst [vmem:[%s194 + $0x2c] sm:$0xf] %v458
      %475 = vst [vmem:[%s194 + $0x30] sm:$0xf] %v459
      %476 = vst [vmem:[%s194 + $0x34] sm:$0xf] %v460
      %477 = vst [vmem:[%s194 + $0x38] sm:$0xf] %v461
      %478 = vst [vmem:[%s194 + $0x3c] sm:$0xf] %v462
      %s479 = smul.u32 16, %s14
      %p480 = scmp.lt.s32.totalorder %s479, 31
      %s481 = scalar_select %p480, %s479, 31
      %s482 = smul.addr %s481, 4
      %s483 = scalar_lea.vmem %s3, %s482
      // Predicated region
      $region33: #{gnn_conv_forward.4} parent=31 // pred_check
        %p484 = pneg %p105
      $region34: #{gnn_conv_forward.4} parent=31 // pred_check_branch
        %486 = sbr.rel (%p484) target = $region36
      $region35: #{gnn_conv_forward.4} parent=31 // pred_region
        %s487 = smul.u32 16, %s14
      $region36: #{gnn_conv_forward.4} parent=31 // pred_fallthru
        _
    $region32: #{gnn_conv_forward.4} parent=5 // pred_fallthru
      _
    %p488 = scmp.le.s32.totalorder 2, %s9
    // Predicated region
    $region37: #{gnn_conv_forward.4} parent=5 // pred_check
      %p489 = pneg %p488
    $region38: #{gnn_conv_forward.4} parent=5 // pred_check_branch
      %491 = sbr.rel (%p489) target = $region40
    $region39: #{gnn_conv_forward.4} parent=5 // pred_region
      %s492 = ssub.s32 %s9, 2
      // Predicated region
      $region41: #{gnn_conv_forward.4} parent=39 // pred_check
        %p493 = pneg %p111
      $region42: #{gnn_conv_forward.4} parent=39 // pred_check_branch
        %495 = sbr.rel (%p493) target = $region44
      $region43: #{gnn_conv_forward.4} parent=39 // pred_region
        %s496 = smul.u32 16, %s15
        %p497 = scmp.lt.s32.totalorder %s496, 31
        %s498 = scalar_select %p497, %s496, 31
        %s499 = smul.addr %s498, 4
        %s500 = scalar_lea.vmem %s3, %s499
      $region44: #{gnn_conv_forward.4} parent=39 // pred_fallthru
        _
    $region40: #{gnn_conv_forward.4} parent=5 // pred_fallthru
      _
  $region6: #{gnn_conv_forward.4} parent=0 // loop_footer
    %s13 = sadd.s32 1, %s9
  $region7: #{gnn_conv_forward.4} parent=0 // loop_footer_branch
    %8 = sbr.rel target = $region3
  $region8: #{gnn_conv_forward.4} parent=0 // loop_exit
    _

// kernel: gnn_conv_forward.7
$region0: #{gnn_conv_forward.7}
  #allocation0 [shape = 'u32[]', space=smem, size = 0x4, offset = 0x4, fixed_abs, tag = 'smem constant byte address 0x4 - core index']
  #allocation1 [shape = 'u32[72,128]{1,0:T(1,128)}', space=vmem, size = 0x9000, scoped, tag = 'internal scratch']
  #allocation2 [shape = 'f32[128,128]{1,0:T(8,128)}', space=vmem, size = 0x10000, scoped, tag = 'scratch operand']
  %s0 = inlined_call_operand.vmem [shape: bf16[256,256], index: 0, kind: input, shape index: {}]
  %s1 = inlined_call_operand.vmem [shape: bf16[256,128], index: 1, kind: input, shape index: {}]
  %s2 = inlined_call_operand.vmem [shape: f32[256,1], index: 2, kind: input, shape index: {}]
  %s3 = inlined_call_operand.vmem [shape: f32[1,128], index: 3, kind: input, shape index: {}]
  %s4 = inlined_call_operand.vmem [shape: f32[256,128], index: 4, kind: output, shape index: {}]
  %s5 = sld [smem:[#allocation0]]
  $region98: #{gnn_conv_forward.7} parent=0
    _
  %s7 = ssub.s32 1, %s5
  %s8 = scalar_select 0, %s7, %s5
  $region1: #{gnn_conv_forward.7} parent=0
    #allocation3 [shape = 'u8[65536]{0}', space=vmem, size = 0x10000, scoped, tag = 'input window, operand 0']
    loop: start=0, step=1, limit=6
    $region2: #{gnn_conv_forward.7} parent=1 // loop_pre_header
      _
    $region3: #{gnn_conv_forward.7} parent=1 // loop_header
      %s10 = sphi 0, %s14
      %p11 = scmp.ge.s32.totalorder %s10, 6
      %s17 = sphi 0, %s29
      %s18 = sphi 0, %s25
      %s19 = sphi 0, %s17
      %s20 = sphi 0, %s18
      %s21 = sphi 0, %s19
      %s22 = sphi 0, %s20
      %s34 = sphi 0, %s36
      %s37 = sphi 0, %s34
      %s38 = sphi 0, %s37
      %s54 = sphi 0, %s38
      %s60 = sphi 0, %s62
      %s63 = sphi 0, %s60
      %s64 = sphi 0, %s63
      %s80 = sphi 0, %s64
      %s86 = sphi 0, %s88
      %s89 = sphi 0, %s86
      %s90 = sphi 0, %s89
      %s106 = sphi 0, %s90
      %s110 = sphi 0, %s110
      %s112 = sphi 0, %s110
      %s113 = sphi 0, %s112
      %s127 = sphi 0, %s113
      %s133 = sphi 0, %s135
      %s136 = sphi 0, %s133
      %s137 = sphi 0, %s136
      %s153 = sphi 0, %s137
    $region4: #{gnn_conv_forward.7} parent=1 // loop_header_branch
      %13 = sbr.rel (%p11) target = $region8
    $region5: #{gnn_conv_forward.7} parent=1 // loop_body
      %s15 = ssub.s32 %s10, 1
      %s16 = ssub.s32 %s10, 2
      %s23 = sadd.s32 1, %s18
      %p24 = scmp.ge.s32.totalorder %s23, 2
      %s25 = scalar_select %p24, 0, %s23
      %s26 = sadd.s32 1, %s17
      %s27 = scalar_select %p24, %s26, %s17
      %p28 = scmp.ge.s32.totalorder %s27, 2
      %s29 = scalar_select %p28, 0, %s27
      %s30 = ssub.s32 %s17, %s29
      %s31 = ssub.s32 %s18, %s25
      %s32 = sor.u32 %s30, %s31
      %p33 = scmp.eq.s32.totalorder %s32, 0
      %s35 = sadd.s32 %s34, 1
      %s36 = scalar_select %p33, %s34, %s35
      %p39 = pneg %p33
      %p40 = scmp.eq.s32.totalorder %s10, 3
      %p41 = por %p39, %p40
      %p42 = scmp.ne.s32.totalorder %s34, %s37
      %p43 = scmp.eq.s32.totalorder %s10, 0
      %p44 = por %p42, %p43
      %p45 = scmp.ne.s32.totalorder %s34, %s37
      %p46 = scmp.eq.s32.totalorder %s15, 3
      %p47 = por %p45, %p46
      %p48 = scmp.ne.s32.totalorder %s37, %s38
      %p49 = scmp.eq.s32.totalorder %s15, 0
      %p50 = por %p48, %p49
      %p51 = scmp.ne.s32.totalorder %s37, %s38
      %p52 = scmp.eq.s32.totalorder %s16, 3
      %p53 = por %p51, %p52
      %p55 = scmp.ne.s32.totalorder %s38, %s54
      %p56 = scmp.eq.s32.totalorder %s16, 0
      %p57 = por %p55, %p56
      %s58 = ssub.s32 %s18, %s25
      %p59 = scmp.eq.s32.totalorder %s58, 0
      %s61 = sadd.s32 %s60, 1
      %s62 = scalar_select %p59, %s60, %s61
      %p65 = pneg %p59
      %p66 = scmp.eq.s32.totalorder %s10, 3
      %p67 = por %p65, %p66
      %p68 = scmp.ne.s32.totalorder %s60, %s63
      %p69 = scmp.eq.s32.totalorder %s10, 0
      %p70 = por %p68, %p69
      %p71 = scmp.ne.s32.totalorder %s60, %s63
      %p72 = scmp.eq.s32.totalorder %s15, 3
      %p73 = por %p71, %p72
      %p74 = scmp.ne.s32.totalorder %s63, %s64
      %p75 = scmp.eq.s32.totalorder %s15, 0
      %p76 = por %p74, %p75
      %p77 = scmp.ne.s32.totalorder %s63, %s64
      %p78 = scmp.eq.s32.totalorder %s16, 3
      %p79 = por %p77, %p78
      %p81 = scmp.ne.s32.totalorder %s64, %s80
      %p82 = scmp.eq.s32.totalorder %s16, 0
      %p83 = por %p81, %p82
      %s84 = ssub.s32 %s17, %s29
      %p85 = scmp.eq.s32.totalorder %s84, 0
      %s87 = sadd.s32 %s86, 1
      %s88 = scalar_select %p85, %s86, %s87
      %p91 = pneg %p85
      %p92 = scmp.eq.s32.totalorder %s10, 3
      %p93 = por %p91, %p92
      %p94 = scmp.ne.s32.totalorder %s86, %s89
      %p95 = scmp.eq.s32.totalorder %s10, 0
      %p96 = por %p94, %p95
      %p97 = scmp.ne.s32.totalorder %s86, %s89
      %p98 = scmp.eq.s32.totalorder %s15, 3
      %p99 = por %p97, %p98
      %p100 = scmp.ne.s32.totalorder %s89, %s90
      %p101 = scmp.eq.s32.totalorder %s15, 0
      %p102 = por %p100, %p101
      %p103 = scmp.ne.s32.totalorder %s89, %s90
      %p104 = scmp.eq.s32.totalorder %s16, 3
      %p105 = por %p103, %p104
      %p107 = scmp.ne.s32.totalorder %s90, %s106
      %p108 = scmp.eq.s32.totalorder %s16, 0
      %p109 = por %p107, %p108
      %s111 = sadd.s32 %s110, 1
      %p114 = scmp.eq.s32.totalorder %s10, 3
      %p115 = scmp.ne.s32.totalorder %s110, %s112
      %p116 = scmp.eq.s32.totalorder %s10, 0
      %p117 = por %p115, %p116
      %p118 = scmp.ne.s32.totalorder %s110, %s112
      %p119 = scmp.eq.s32.totalorder %s15, 3
      %p120 = por %p118, %p119
      %p121 = scmp.ne.s32.totalorder %s112, %s113
      %p122 = scmp.eq.s32.totalorder %s15, 0
      %p123 = por %p121, %p122
      %p124 = scmp.ne.s32.totalorder %s112, %s113
      %p125 = scmp.eq.s32.totalorder %s16, 3
      %p126 = por %p124, %p125
      %p128 = scmp.ne.s32.totalorder %s113, %s127
      %p129 = scmp.eq.s32.totalorder %s16, 0
      %p130 = por %p128, %p129
      %s131 = ssub.s32 %s17, %s29
      %p132 = scmp.eq.s32.totalorder %s131, 0
      %s134 = sadd.s32 %s133, 1
      %s135 = scalar_select %p132, %s133, %s134
      %p138 = pneg %p132
      %p139 = scmp.eq.s32.totalorder %s10, 3
      %p140 = por %p138, %p139
      %p141 = scmp.ne.s32.totalorder %s133, %s136
      %p142 = scmp.eq.s32.totalorder %s10, 0
      %p143 = por %p141, %p142
      %p144 = scmp.ne.s32.totalorder %s133, %s136
      %p145 = scmp.eq.s32.totalorder %s15, 3
      %p146 = por %p144, %p145
      %p147 = scmp.ne.s32.totalorder %s136, %s137
      %p148 = scmp.eq.s32.totalorder %s15, 0
      %p149 = por %p147, %p148
      %p150 = scmp.ne.s32.totalorder %s136, %s137
      %p151 = scmp.eq.s32.totalorder %s16, 3
      %p152 = por %p150, %p151
      %p154 = scmp.ne.s32.totalorder %s137, %s153
      %p155 = scmp.eq.s32.totalorder %s16, 0
      %p156 = por %p154, %p155
      %p157 = scmp.le.s32.totalorder 1, %s10
      %p158 = scmp.lt.s32.totalorder %s10, 5
      %p159 = pnand %p157, %p158
      %p160 = pneg %p159
      // Predicated region
      $region9: #{gnn_conv_forward.7} parent=5 // pred_check
        _
      $region10: #{gnn_conv_forward.7} parent=5 // pred_check_branch
        %162 = sbr.rel (%p159) target = $region12
      $region11: #{gnn_conv_forward.7} parent=5 // pred_region
        %s163 = ssub.s32 %s10, 1
        // Predicated region
        $region13: #{gnn_conv_forward.7} parent=11 // pred_check
          %p164 = pneg %p123
        $region14: #{gnn_conv_forward.7} parent=11 // pred_check_branch
          %166 = sbr.rel (%p164) target = $region16
        $region15: #{gnn_conv_forward.7} parent=11 // pred_region
          _
        $region16: #{gnn_conv_forward.7} parent=11 // pred_fallthru
          _
      $region12: #{gnn_conv_forward.7} parent=5 // pred_fallthru
        _
      %p167 = scmp.lt.s32.totalorder %s10, 4
      // Predicated region
      $region17: #{gnn_conv_forward.7} parent=5 // pred_check
        %p168 = pneg %p167
      $region18: #{gnn_conv_forward.7} parent=5 // pred_check_branch
        %170 = sbr.rel (%p168) target = $region20
      $region19: #{gnn_conv_forward.7} parent=5 // pred_region
        // Predicated region
        $region21: #{gnn_conv_forward.7} parent=19 // pred_check
          %p171 = pneg %p44
        $region22: #{gnn_conv_forward.7} parent=19 // pred_check_branch
          %173 = sbr.rel (%p171) target = $region24
        $region23: #{gnn_conv_forward.7} parent=19 // pred_region
          %s174 = sand.u32 %s34, 1
          %s175 = sand.u32 %s34, 1
          %s176 = smul.addr %s175, 64
          %s177 = scalar_lea.vmem [#allocation3], %s176
          %s178 = smul.u32 16, %s17
          %s179 = smul.addr %s178, 2
          %s180 = sadd.s32 %s18, %s179
          %s181 = smul.addr %s180, 4
          %s182 = scalar_lea.vmem %s0, %s181
          // Predicated region
          $region25: #{gnn_conv_forward.7} parent=23 // pred_check
            _
          $region26: #{gnn_conv_forward.7} parent=23 // pred_check_branch
            %184 = sbr.rel (0) target = $region28
          $region27: #{gnn_conv_forward.7} parent=23 // pred_region
            // Predicated region
            $region29: #{gnn_conv_forward.7} parent=27 // pred_check
              _
            $region30: #{gnn_conv_forward.7} parent=27 // pred_check_branch
              %186 = sbr.rel target = $region32
            $region31: #{gnn_conv_forward.7} parent=27 // pred_region
              // Predicated region
              $region44: #{gnn_conv_forward.7} parent=31 // pred_check
                _
              $region45: #{gnn_conv_forward.7} parent=31 // pred_check_branch
                %232 = sbr.rel (0) target = $region47
              $region46: #{gnn_conv_forward.7} parent=31 // pred_region
                loop: start=0, step=1, limit=1
                $region48: #{gnn_conv_forward.7} parent=46 // loop_pre_header
                  _
                $region49: #{gnn_conv_forward.7} parent=46 // loop_header
                  %s234 = sphi 0, %s238
                  %p235 = scmp.ge.s32.totalorder %s234, 1
                  %s239 = sphi %s182, %s182
                  %s240 = sphi %s177, %s177
                $region50: #{gnn_conv_forward.7} parent=46 // loop_header_branch
                  %237 = sbr.rel (%p235) target = $region54
                $region51: #{gnn_conv_forward.7} parent=46 // loop_body
                  _
                $region52: #{gnn_conv_forward.7} parent=46 // loop_footer
                  %s238 = sadd.s32 1, %s234
                $region53: #{gnn_conv_forward.7} parent=46 // loop_footer_branch
                  %233 = sbr.rel target = $region49
                $region54: #{gnn_conv_forward.7} parent=46 // loop_exit
                  _
                %s242 = ssub.s32 16, 1
                loop: start=0, step=1, limit=1
                $region55: #{gnn_conv_forward.7} parent=46 // loop_pre_header
                  _
                $region56: #{gnn_conv_forward.7} parent=46 // loop_header
                  %s244 = sphi 0, %s248
                  %p245 = scmp.ge.s32.totalorder %s244, 1
                  %s249 = sphi %s182, %s182
                  %s250 = sphi %s177, %s177
                $region57: #{gnn_conv_forward.7} parent=46 // loop_header_branch
                  %247 = sbr.rel (%p245) target = $region61
                $region58: #{gnn_conv_forward.7} parent=46 // loop_body
                  %v251 = vld [vmem:[%s249] sm:%s242]
                  %252 = vst [vmem:[%s250] sm:%s242] %v251
                  %v253 = vld [vmem:[%s249 + $0x8] sm:%s242]
                  %254 = vst [vmem:[%s250 + $0x4] sm:%s242] %v253
                  %v255 = vld [vmem:[%s249 + $0x10] sm:%s242]
                  %256 = vst [vmem:[%s250 + $0x8] sm:%s242] %v255
                  %v257 = vld [vmem:[%s249 + $0x18] sm:%s242]
                  %258 = vst [vmem:[%s250 + $0xc] sm:%s242] %v257
                  %v259 = vld [vmem:[%s249 + $0x20] sm:%s242]
                  %260 = vst [vmem:[%s250 + $0x10] sm:%s242] %v259
                  %v261 = vld [vmem:[%s249 + $0x28] sm:%s242]
                  %262 = vst [vmem:[%s250 + $0x14] sm:%s242] %v261
                  %v263 = vld [vmem:[%s249 + $0x30] sm:%s242]
                  %264 = vst [vmem:[%s250 + $0x18] sm:%s242] %v263
                  %v265 = vld [vmem:[%s249 + $0x38] sm:%s242]
                  %266 = vst [vmem:[%s250 + $0x1c] sm:%s242] %v265
                  %v267 = vld [vmem:[%s249 + $0x40] sm:%s242]
                  %268 = vst [vmem:[%s250 + $0x20] sm:%s242] %v267
                  %v269 = vld [vmem:[%s249 + $0x48] sm:%s242]
                  %270 = vst [vmem:[%s250 + $0x24] sm:%s242] %v269
                  %v271 = vld [vmem:[%s249 + $0x50] sm:%s242]
                  %272 = vst [vmem:[%s250 + $0x28] sm:%s242] %v271
                  %v273 = vld [vmem:[%s249 + $0x58] sm:%s242]
                  %274 = vst [vmem:[%s250 + $0x2c] sm:%s242] %v273
                  %v275 = vld [vmem:[%s249 + $0x60] sm:%s242]
                  %276 = vst [vmem:[%s250 + $0x30] sm:%s242] %v275
                  %v277 = vld [vmem:[%s249 + $0x68] sm:%s242]
                  %278 = vst [vmem:[%s250 + $0x34] sm:%s242] %v277
                  %v279 = vld [vmem:[%s249 + $0x70] sm:%s242]
                  %280 = vst [vmem:[%s250 + $0x38] sm:%s242] %v279
                  %v281 = vld [vmem:[%s249 + $0x78] sm:%s242]
                  %282 = vst [vmem:[%s250 + $0x3c] sm:%s242] %v281
                $region59: #{gnn_conv_forward.7} parent=46 // loop_footer
                  %s248 = sadd.s32 1, %s244
                $region60: #{gnn_conv_forward.7} parent=46 // loop_footer_branch
                  %243 = sbr.rel target = $region56
                $region61: #{gnn_conv_forward.7} parent=46 // loop_exit
                  _
              $region47: #{gnn_conv_forward.7} parent=31 // pred_fallthru
                _
            $region32: #{gnn_conv_forward.7} parent=27 // pred_fallthru
              _
            // Predicated region
            $region33: #{gnn_conv_forward.7} parent=27 // pred_check
              _
            $region34: #{gnn_conv_forward.7} parent=27 // pred_check_branch
              %188 = sbr.rel (0) target = $region36
            $region35: #{gnn_conv_forward.7} parent=27 // pred_region
              %s190 = ssub.s32 16, 1
              loop: start=0, step=1, limit=1
              $region37: #{gnn_conv_forward.7} parent=35 // loop_pre_header
                _
              $region38: #{gnn_conv_forward.7} parent=35 // loop_header
                %s192 = sphi 0, %s196
                %p193 = scmp.ge.s32.totalorder %s192, 1
                %s197 = sphi %s182, %s182
                %s198 = sphi %s177, %s177
              $region39: #{gnn_conv_forward.7} parent=35 // loop_header_branch
                %195 = sbr.rel (%p193) target = $region43
              $region40: #{gnn_conv_forward.7} parent=35 // loop_body
                %v199 = vld [vmem:[%s197] sm:%s190]
                %200 = vst [vmem:[%s198] sm:%s190] %v199
                %v201 = vld [vmem:[%s197 + $0x8] sm:%s190]
                %202 = vst [vmem:[%s198 + $0x4] sm:%s190] %v201
                %v203 = vld [vmem:[%s197 + $0x10] sm:%s190]
                %204 = vst [vmem:[%s198 + $0x8] sm:%s190] %v203
                %v205 = vld [vmem:[%s197 + $0x18] sm:%s190]
                %206 = vst [vmem:[%s198 + $0xc] sm:%s190] %v205
                %v207 = vld [vmem:[%s197 + $0x20] sm:%s190]
                %208 = vst [vmem:[%s198 + $0x10] sm:%s190] %v207
                %v209 = vld [vmem:[%s197 + $0x28] sm:%s190]
                %210 = vst [vmem:[%s198 + $0x14] sm:%s190] %v209
                %v211 = vld [vmem:[%s197 + $0x30] sm:%s190]
                %212 = vst [vmem:[%s198 + $0x18] sm:%s190] %v211
                %v213 = vld [vmem:[%s197 + $0x38] sm:%s190]
                %214 = vst [vmem:[%s198 + $0x1c] sm:%s190] %v213
                %v215 = vld [vmem:[%s197 + $0x40] sm:%s190]
                %216 = vst [vmem:[%s198 + $0x20] sm:%s190] %v215
                %v217 = vld [vmem:[%s197 + $0x48] sm:%s190]
                %218 = vst [vmem:[%s198 + $0x24] sm:%s190] %v217
                %v219 = vld [vmem:[%s197 + $0x50] sm:%s190]
                %220 = vst [vmem:[%s198 + $0x28] sm:%s190] %v219
                %v221 = vld [vmem:[%s197 + $0x58] sm:%s190]
                %222 = vst [vmem:[%s198 + $0x2c] sm:%s190] %v221
                %v223 = vld [vmem:[%s197 + $0x60] sm:%s190]
                %224 = vst [vmem:[%s198 + $0x30] sm:%s190] %v223
                %v225 = vld [vmem:[%s197 + $0x68] sm:%s190]
                %226 = vst [vmem:[%s198 + $0x34] sm:%s190] %v225
                %v227 = vld [vmem:[%s197 + $0x70] sm:%s190]
                %228 = vst [vmem:[%s198 + $0x38] sm:%s190] %v227
                %v229 = vld [vmem:[%s197 + $0x78] sm:%s190]
                %230 = vst [vmem:[%s198 + $0x3c] sm:%s190] %v229
              $region41: #{gnn_conv_forward.7} parent=35 // loop_footer
                %s196 = sadd.s32 1, %s192
              $region42: #{gnn_conv_forward.7} parent=35 // loop_footer_branch
                %191 = sbr.rel target = $region38
              $region43: #{gnn_conv_forward.7} parent=35 // loop_exit
                _
            $region36: #{gnn_conv_forward.7} parent=27 // pred_fallthru
              _
          $region28: #{gnn_conv_forward.7} parent=23 // pred_fallthru
            _
          %283 = vnop
        $region24: #{gnn_conv_forward.7} parent=19 // pred_fallthru
          _
        // Predicated region
        $region62: #{gnn_conv_forward.7} parent=19 // pred_check
          %p284 = pneg %p70
        $region63: #{gnn_conv_forward.7} parent=19 // pred_check_branch
          %286 = sbr.rel (%p284) target = $region65
        $region64: #{gnn_conv_forward.7} parent=19 // pred_region
          %s287 = smul.u32 16, %s18
          %p288 = scmp.lt.s32.totalorder %s287, 31
          %s289 = scalar_select %p288, %s287, 31
          %s290 = smul.addr %s289, 4
          %s291 = scalar_lea.vmem %s1, %s290
          %s292 = smul.u32 16, %s18
        $region65: #{gnn_conv_forward.7} parent=19 // pred_fallthru
          _
        // Predicated region
        $region66: #{gnn_conv_forward.7} parent=19 // pred_check
          %p293 = pneg %p96
        $region67: #{gnn_conv_forward.7} parent=19 // pred_check_branch
          %295 = sbr.rel (%p293) target = $region69
        $region68: #{gnn_conv_forward.7} parent=19 // pred_region
          %s296 = smul.u32 16, %s17
          %p297 = scmp.lt.s32.totalorder %s296, 31
          %s298 = scalar_select %p297, %s296, 31
          %s299 = smul.addr %s298, 8
          %s300 = scalar_lea.vmem %s2, %s299
          %s301 = smul.u32 16, %s17
        $region69: #{gnn_conv_forward.7} parent=19 // pred_fallthru
          _
      $region20: #{gnn_conv_forward.7} parent=5 // pred_fallthru
        _
      %p302 = scmp.le.s32.totalorder 1, %s10
      %p303 = scmp.lt.s32.totalorder %s10, 5
      %p304 = pnand %p302, %p303
      %p305 = pneg %p304
      // Predicated region
      $region70: #{gnn_conv_forward.7} parent=5 // pred_check
        _
      $region71: #{gnn_conv_forward.7} parent=5 // pred_check_branch
        %307 = sbr.rel (%p304) target = $region73
      $region72: #{gnn_conv_forward.7} parent=5 // pred_region
        %s308 = ssub.s32 %s10, 1
        %s309 = sand.u32 %s37, 1
        %s310 = sand.u32 %s37, 1
        %s311 = smul.addr %s310, 64
        %s312 = scalar_lea.vmem [#allocation3], %s311
        // Predicated region
        $region74: #{gnn_conv_forward.7} parent=72 // pred_check
          %p313 = pneg %p50
        $region75: #{gnn_conv_forward.7} parent=72 // pred_check_branch
          %315 = sbr.rel (%p313) target = $region77
        $region76: #{gnn_conv_forward.7} parent=72 // pred_region
          _
        $region77: #{gnn_conv_forward.7} parent=72 // pred_fallthru
          _
        %s316 = sand.u32 %s37, 1
        %s317 = sand.u32 %s37, 1
        %s318 = smul.addr %s317, 64
        %s319 = scalar_lea.vmem [#allocation3], %s318
        %p320 = pneg %p50
        %p321 = pneg %p47
        %s322 = smul.u32 16, %s20
        %p323 = scmp.lt.s32.totalorder %s322, 31
        %s324 = scalar_select %p323, %s322, 31
        %s325 = smul.addr %s324, 4
        %s326 = scalar_lea.vmem %s1, %s325
        %p327 = pneg %p76
        %p328 = pneg %p73
        %s329 = smul.u32 16, %s19
        %p330 = scmp.lt.s32.totalorder %s329, 31
        %s331 = scalar_select %p330, %s329, 31
        %s332 = smul.addr %s331, 8
        %s333 = scalar_lea.vmem %s2, %s332
        %p334 = pneg %p102
        %p335 = pneg %p99
        %p336 = pneg %p123
        %p337 = pneg %p120
        %p338 = pneg %p149
        %p339 = pneg %p146
        %s340 = smul.u32 16, %s19
        %p341 = scmp.lt.s32.totalorder %s340, 31
        %s342 = scalar_select %p341, %s340, 31
        %s343 = smul.addr %s342, 8
        %s344 = scalar_lea.vmem %s4, %s343
        %s345 = smul.u32 16, %s19
        %s346 = smul.u32 16, %s20
        %p347 = scmp.lt.s32.totalorder %s346, 31
        %s348 = scalar_select %p347, %s346, 31
        %s349 = smul.addr %s348, 4
        %s350 = scalar_lea.vmem %s1, %s349
        %s351 = smul.u32 16, %s20
        %s352 = smul.u32 16, %s19
        %p353 = scmp.lt.s32.totalorder %s352, 31
        %s354 = scalar_select %p353, %s352, 31
        %s355 = smul.addr %s354, 8
        %s356 = scalar_lea.vmem %s2, %s355
        %s357 = smul.u32 16, %s19
        %s358 = smul.u32 16, %s19
        %p359 = scmp.lt.s32.totalorder %s358, 31
        %s360 = scalar_select %p359, %s358, 31
        %s361 = smul.addr %s360, 8
        %s362 = scalar_lea.vmem %s4, %s361
        %s363 = smul.u32 16, %s19
        %p364 = scmp.eq.s32.totalorder %s20, 0
        // Predicated region
        $region78: #{gnn_conv_forward.7} parent=72 // pred_check
          %p365 = pneg %p364
        $region79: #{gnn_conv_forward.7} parent=72 // pred_check_branch
          %367 = sbr.rel (%p365) target = $region81
        $region80: #{gnn_conv_forward.7} parent=72 // pred_region
          %368 = vst [vmem:[#allocation2] sm:$0xff] 0.0
          %369 = vst [vmem:[#allocation2 + $0x8] sm:$0xff] 0.0
          %370 = vst [vmem:[#allocation2 + $0x10] sm:$0xff] 0.0
          %371 = vst [vmem:[#allocation2 + $0x18] sm:$0xff] 0.0
          %372 = vst [vmem:[#allocation2 + $0x20] sm:$0xff] 0.0
          %373 = vst [vmem:[#allocation2 + $0x28] sm:$0xff] 0.0
          %374 = vst [vmem:[#allocation2 + $0x30] sm:$0xff] 0.0
          %375 = vst [vmem:[#allocation2 + $0x38] sm:$0xff] 0.0
          %376 = vst [vmem:[#allocation2 + $0x40] sm:$0xff] 0.0
          %377 = vst [vmem:[#allocation2 + $0x48] sm:$0xff] 0.0
          %378 = vst [vmem:[#allocation2 + $0x50] sm:$0xff] 0.0
          %379 = vst [vmem:[#allocation2 + $0x58] sm:$0xff] 0.0
          %380 = vst [vmem:[#allocation2 + $0x60] sm:$0xff] 0.0
          %381 = vst [vmem:[#allocation2 + $0x68] sm:$0xff] 0.0
          %382 = vst [vmem:[#allocation2 + $0x70] sm:$0xff] 0.0
          %383 = vst [vmem:[#allocation2 + $0x78] sm:$0xff] 0.0
        $region81: #{gnn_conv_forward.7} parent=72 // pred_fallthru
          _
        %v384 = vld [vmem:[#allocation2] sm:$0xff]
        %v385 = vld [vmem:[#allocation2 + $0x8] sm:$0xff]
        %v386 = vld [vmem:[#allocation2 + $0x10] sm:$0xff]
        %v387 = vld [vmem:[#allocation2 + $0x18] sm:$0xff]
        %v388 = vld [vmem:[#allocation2 + $0x20] sm:$0xff]
        %v389 = vld [vmem:[#allocation2 + $0x28] sm:$0xff]
        %v390 = vld [vmem:[#allocation2 + $0x30] sm:$0xff]
        %v391 = vld [vmem:[#allocation2 + $0x38] sm:$0xff]
        %v392 = vld [vmem:[#allocation2 + $0x40] sm:$0xff]
        %v393 = vld [vmem:[#allocation2 + $0x48] sm:$0xff]
        %v394 = vld [vmem:[#allocation2 + $0x50] sm:$0xff]
        %v395 = vld [vmem:[#allocation2 + $0x58] sm:$0xff]
        %v396 = vld [vmem:[#allocation2 + $0x60] sm:$0xff]
        %v397 = vld [vmem:[#allocation2 + $0x68] sm:$0xff]
        %v398 = vld [vmem:[#allocation2 + $0x70] sm:$0xff]
        %v399 = vld [vmem:[#allocation2 + $0x78] sm:$0xff]
        %v400 = vld [vmem:[%s312] sm:$0xf]
        %v401 = vld [vmem:[%s312 + $0x4] sm:$0xf]
        %v402 = vld [vmem:[%s312 + $0x8] sm:$0xf]
        %v403 = vld [vmem:[%s312 + $0xc] sm:$0xf]
        %v404 = vld [vmem:[%s312 + $0x10] sm:$0xf]
        %v405 = vld [vmem:[%s312 + $0x14] sm:$0xf]
        %v406 = vld [vmem:[%s312 + $0x18] sm:$0xf]
        %v407 = vld [vmem:[%s312 + $0x1c] sm:$0xf]
        %v408 = vld [vmem:[%s312 + $0x20] sm:$0xf]
        %v409 = vld [vmem:[%s312 + $0x24] sm:$0xf]
        %v410 = vld [vmem:[%s312 + $0x28] sm:$0xf]
        %v411 = vld [vmem:[%s312 + $0x2c] sm:$0xf]
        %v412 = vld [vmem:[%s312 + $0x30] sm:$0xf]
        %v413 = vld [vmem:[%s312 + $0x34] sm:$0xf]
        %v414 = vld [vmem:[%s312 + $0x38] sm:$0xf]
        %v415 = vld [vmem:[%s312 + $0x3c] sm:$0xf]
        %v416 = vld [vmem:[%s350] sm:$0xf]
        %v417 = vld [vmem:[%s350 + $0x4] sm:$0xf]
        %v418 = vld [vmem:[%s350 + $0x8] sm:$0xf]
        %v419 = vld [vmem:[%s350 + $0xc] sm:$0xf]
        %v420 = vld [vmem:[%s350 + $0x10] sm:$0xf]
        %v421 = vld [vmem:[%s350 + $0x14] sm:$0xf]
        %v422 = vld [vmem:[%s350 + $0x18] sm:$0xf]
        %v423 = vld [vmem:[%s350 + $0x1c] sm:$0xf]
        %v424 = vld [vmem:[%s350 + $0x20] sm:$0xf]
        %v425 = vld [vmem:[%s350 + $0x24] sm:$0xf]
        %v426 = vld [vmem:[%s350 + $0x28] sm:$0xf]
        %v427 = vld [vmem:[%s350 + $0x2c] sm:$0xf]
        %v428 = vld [vmem:[%s350 + $0x30] sm:$0xf]
        %v429 = vld [vmem:[%s350 + $0x34] sm:$0xf]
        %v430 = vld [vmem:[%s350 + $0x38] sm:$0xf]
        %v431 = vld [vmem:[%s350 + $0x3c] sm:$0xf]
        %v448 = vunpack.c.l.b16 %v400
        %v449 = vunpack.c.l.b16 %v401
        %v450 = vunpack.c.l.b16 %v402
        %v451 = vunpack.c.l.b16 %v403
        %v452 = vunpack.c.l.b16 %v404
        %v453 = vunpack.c.l.b16 %v405
        %v454 = vunpack.c.l.b16 %v406
        %v455 = vunpack.c.l.b16 %v407
        %v456 = vunpack.c.l.b16 %v408
        %v457 = vunpack.c.l.b16 %v409
        %v458 = vunpack.c.l.b16 %v410
        %v459 = vunpack.c.l.b16 %v411
        %v460 = vunpack.c.l.b16 %v412
        %v461 = vunpack.c.l.b16 %v413
        %v462 = vunpack.c.l.b16 %v414
        %v463 = vunpack.c.l.b16 %v415
        %v464 = vpack.c.b16 %v449, %v448
        %v465 = vpack.c.b16 %v451, %v450
        %v466 = vpack.c.b16 %v453, %v452
        %v467 = vpack.c.b16 %v455, %v454
        %v468 = vpack.c.b16 %v457, %v456
        %v469 = vpack.c.b16 %v459, %v458
        %v470 = vpack.c.b16 %v461, %v460
        %v471 = vpack.c.b16 %v463, %v462
        %v496 = vunpack.c.l.b16 %v416
        %v497 = vunpack.c.l.b16 %v417
        %v498 = vunpack.c.l.b16 %v418
        %v499 = vunpack.c.l.b16 %v419
        %v500 = vunpack.c.l.b16 %v420
        %v501 = vunpack.c.l.b16 %v421
        %v502 = vunpack.c.l.b16 %v422
        %v503 = vunpack.c.l.b16 %v423
        %v504 = vunpack.c.l.b16 %v424
        %v505 = vunpack.c.l.b16 %v425
        %v506 = vunpack.c.l.b16 %v426
        %v507 = vunpack.c.l.b16 %v427
        %v508 = vunpack.c.l.b16 %v428
        %v509 = vunpack.c.l.b16 %v429
        %v510 = vunpack.c.l.b16 %v430
        %v511 = vunpack.c.l.b16 %v431
        %v512 = vpack.c.b16 %v497, %v496
        %v513 = vpack.c.b16 %v499, %v498
        %v514 = vpack.c.b16 %v501, %v500
        %v515 = vpack.c.b16 %v503, %v502
        %v516 = vpack.c.b16 %v505, %v504
        %v517 = vpack.c.b16 %v507, %v506
        %v518 = vpack.c.b16 %v509, %v508
        %v519 = vpack.c.b16 %v511, %v510
        %528 = vmatpush.bf16.msra.mxu0 %v519
        %529 = vmatpush.bf16.msra.mxu0 %v518
        %530 = vmatpush.bf16.msra.mxu0 %v517
        %531 = vmatpush.bf16.msra.mxu0 %v516
        %532 = vmatpush.bf16.msra.mxu0 %v515
        %533 = vmatpush.bf16.msra.mxu0 %v514
        %534 = vmatpush.bf16.msra.mxu0 %v513
        %535 = vmatpush.bf16.msra.mxu0 %v512
        %536 = vmatmul.bf16.gmra.mxu0 %v464
        %v537 = vpop.f32.mrf.mxu0
        %v538 = vadd.f32 0.0, %v537
        %v539 = vpop.f32.mrf.mxu0
        %v540 = vadd.f32 0.0, %v539
        %541 = vmatmul.bf16.gmra.mxu0 %v465
        %v542 = vpop.f32.mrf.mxu0
        %v543 = vadd.f32 0.0, %v542
        %v544 = vpop.f32.mrf.mxu0
        %v545 = vadd.f32 0.0, %v544
        %546 = vmatmul.bf16.gmra.mxu0 %v466
        %v547 = vpop.f32.mrf.mxu0
        %v548 = vadd.f32 0.0, %v547
        %v549 = vpop.f32.mrf.mxu0
        %v550 = vadd.f32 0.0, %v549
        %551 = vmatmul.bf16.gmra.mxu0 %v467
        %v552 = vpop.f32.mrf.mxu0
        %v553 = vadd.f32 0.0, %v552
        %v554 = vpop.f32.mrf.mxu0
        %v555 = vadd.f32 0.0, %v554
        %556 = vmatmul.bf16.gmra.mxu0 %v468
        %v557 = vpop.f32.mrf.mxu0
        %v558 = vadd.f32 0.0, %v557
        %v559 = vpop.f32.mrf.mxu0
        %v560 = vadd.f32 0.0, %v559
        %561 = vmatmul.bf16.gmra.mxu0 %v469
        %v562 = vpop.f32.mrf.mxu0
        %v563 = vadd.f32 0.0, %v562
        %v564 = vpop.f32.mrf.mxu0
        %v565 = vadd.f32 0.0, %v564
        %566 = vmatmul.bf16.gmra.mxu0 %v470
        %v567 = vpop.f32.mrf.mxu0
        %v568 = vadd.f32 0.0, %v567
        %v569 = vpop.f32.mrf.mxu0
        %v570 = vadd.f32 0.0, %v569
        %571 = vmatmul.bf16.gmra.mxu0 %v471
        %v572 = vpop.f32.mrf.mxu0
        %v573 = vadd.f32 0.0, %v572
        %v574 = vpop.f32.mrf.mxu0
        %v575 = vadd.f32 0.0, %v574
        %576 = vdwg.mxu0
        %v577 = vadd.f32 %v384, %v538
        %v578 = vadd.f32 %v385, %v540
        %v579 = vadd.f32 %v386, %v543
        %v580 = vadd.f32 %v387, %v545
        %v581 = vadd.f32 %v388, %v548
        %v582 = vadd.f32 %v389, %v550
        %v583 = vadd.f32 %v390, %v553
        %v584 = vadd.f32 %v391, %v555
        %v585 = vadd.f32 %v392, %v558
        %v586 = vadd.f32 %v393, %v560
        %v587 = vadd.f32 %v394, %v563
        %v588 = vadd.f32 %v395, %v565
        %v589 = vadd.f32 %v396, %v568
        %v590 = vadd.f32 %v397, %v570
        %v591 = vadd.f32 %v398, %v573
        %v592 = vadd.f32 %v399, %v575
        %593 = vst [vmem:[#allocation2] sm:$0xff] %v577
        %594 = vst [vmem:[#allocation2 + $0x8] sm:$0xff] %v578
        %595 = vst [vmem:[#allocation2 + $0x10] sm:$0xff] %v579
        %596 = vst [vmem:[#allocation2 + $0x18] sm:$0xff] %v580
        %597 = vst [vmem:[#allocation2 + $0x20] sm:$0xff] %v581
        %598 = vst [vmem:[#allocation2 + $0x28] sm:$0xff] %v582
        %599 = vst [vmem:[#allocation2 + $0x30] sm:$0xff] %v583
        %600 = vst [vmem:[#allocation2 + $0x38] sm:$0xff] %v584
        %601 = vst [vmem:[#allocation2 + $0x40] sm:$0xff] %v585
        %602 = vst [vmem:[#allocation2 + $0x48] sm:$0xff] %v586
        %603 = vst [vmem:[#allocation2 + $0x50] sm:$0xff] %v587
        %604 = vst [vmem:[#allocation2 + $0x58] sm:$0xff] %v588
        %605 = vst [vmem:[#allocation2 + $0x60] sm:$0xff] %v589
        %606 = vst [vmem:[#allocation2 + $0x68] sm:$0xff] %v590
        %607 = vst [vmem:[#allocation2 + $0x70] sm:$0xff] %v591
        %608 = vst [vmem:[#allocation2 + $0x78] sm:$0xff] %v592
        %p609 = scmp.eq.s32.totalorder %s20, 1
        // Predicated region
        $region82: #{gnn_conv_forward.7} parent=72 // pred_check
          %p610 = pneg %p609
        $region83: #{gnn_conv_forward.7} parent=72 // pred_check_branch
          %612 = sbr.rel (%p610) target = $region85
        $region84: #{gnn_conv_forward.7} parent=72 // pred_region
          %v613 = vld [vmem:[#allocation2] sm:$0xff]
          %v614 = vld [vmem:[#allocation2 + $0x8] sm:$0xff]
          %v615 = vld [vmem:[#allocation2 + $0x10] sm:$0xff]
          %v616 = vld [vmem:[#allocation2 + $0x18] sm:$0xff]
          %v617 = vld [vmem:[#allocation2 + $0x20] sm:$0xff]
          %v618 = vld [vmem:[#allocation2 + $0x28] sm:$0xff]
          %v619 = vld [vmem:[#allocation2 + $0x30] sm:$0xff]
          %v620 = vld [vmem:[#allocation2 + $0x38] sm:$0xff]
          %v621 = vld [vmem:[#allocation2 + $0x40] sm:$0xff]
          %v622 = vld [vmem:[#allocation2 + $0x48] sm:$0xff]
          %v623 = vld [vmem:[#allocation2 + $0x50] sm:$0xff]
          %v624 = vld [vmem:[#allocation2 + $0x58] sm:$0xff]
          %v625 = vld [vmem:[#allocation2 + $0x60] sm:$0xff]
          %v626 = vld [vmem:[#allocation2 + $0x68] sm:$0xff]
          %v627 = vld [vmem:[#allocation2 + $0x70] sm:$0xff]
          %v628 = vld [vmem:[#allocation2 + $0x78] sm:$0xff]
          %v629 = vld [vmem:[%s356] sm:$0xff]
          %v630 = vld [vmem:[%s356 + $0x8] sm:$0xff]
          %v631 = vld [vmem:[%s356 + $0x10] sm:$0xff]
          %v632 = vld [vmem:[%s356 + $0x18] sm:$0xff]
          %v633 = vld [vmem:[%s356 + $0x20] sm:$0xff]
          %v634 = vld [vmem:[%s356 + $0x28] sm:$0xff]
          %v635 = vld [vmem:[%s356 + $0x30] sm:$0xff]
          %v636 = vld [vmem:[%s356 + $0x38] sm:$0xff]
          %v637 = vld [vmem:[%s356 + $0x40] sm:$0xff]
          %v638 = vld [vmem:[%s356 + $0x48] sm:$0xff]
          %v639 = vld [vmem:[%s356 + $0x50] sm:$0xff]
          %v640 = vld [vmem:[%s356 + $0x58] sm:$0xff]
          %v641 = vld [vmem:[%s356 + $0x60] sm:$0xff]
          %v642 = vld [vmem:[%s356 + $0x68] sm:$0xff]
          %v643 = vld [vmem:[%s356 + $0x70] sm:$0xff]
          %v644 = vld [vmem:[%s356 + $0x78] sm:$0xff]
          %646 = vset.pattern.permute.xlu0 0
          %647 = vperm.xlu0 %646, %v629
          %v648 = vpop.permute.xlu0 %647
          %651 = vset.pattern.permute.xlu0 0
          %652 = vperm.xlu0 %651, %v630
          %v653 = vpop.permute.xlu0 %652
          %656 = vset.pattern.permute.xlu0 0
          %657 = vperm.xlu0 %656, %v631
          %v658 = vpop.permute.xlu0 %657
          %661 = vset.pattern.permute.xlu0 0
          %662 = vperm.xlu0 %661, %v632
          %v663 = vpop.permute.xlu0 %662
          %666 = vset.pattern.permute.xlu0 0
          %667 = vperm.xlu0 %666, %v633
          %v668 = vpop.permute.xlu0 %667
          %671 = vset.pattern.permute.xlu0 0
          %672 = vperm.xlu0 %671, %v634
          %v673 = vpop.permute.xlu0 %672
          %676 = vset.pattern.permute.xlu0 0
          %677 = vperm.xlu0 %676, %v635
          %v678 = vpop.permute.xlu0 %677
          %681 = vset.pattern.permute.xlu0 0
          %682 = vperm.xlu0 %681, %v636
          %v683 = vpop.permute.xlu0 %682
          %686 = vset.pattern.permute.xlu0 0
          %687 = vperm.xlu0 %686, %v637
          %v688 = vpop.permute.xlu0 %687
          %691 = vset.pattern.permute.xlu0 0
          %692 = vperm.xlu0 %691, %v638
          %v693 = vpop.permute.xlu0 %692
          %696 = vset.pattern.permute.xlu0 0
          %697 = vperm.xlu0 %696, %v639
          %v698 = vpop.permute.xlu0 %697
          %701 = vset.pattern.permute.xlu0 0
          %702 = vperm.xlu0 %701, %v640
          %v703 = vpop.permute.xlu0 %702
          %706 = vset.pattern.permute.xlu0 0
          %707 = vperm.xlu0 %706, %v641
          %v708 = vpop.permute.xlu0 %707
          %711 = vset.pattern.permute.xlu0 0
          %712 = vperm.xlu0 %711, %v642
          %v713 = vpop.permute.xlu0 %712
          %716 = vset.pattern.permute.xlu0 0
          %717 = vperm.xlu0 %716, %v643
          %v718 = vpop.permute.xlu0 %717
          %721 = vset.pattern.permute.xlu0 0
          %722 = vperm.xlu0 %721, %v644
          %v723 = vpop.permute.xlu0 %722
          %v725 = vmul.f32 %v613, %v648
          %v726 = vmul.f32 %v614, %v653
          %v727 = vmul.f32 %v615, %v658
          %v728 = vmul.f32 %v616, %v663
          %v729 = vmul.f32 %v617, %v668
          %v730 = vmul.f32 %v618, %v673
          %v731 = vmul.f32 %v619, %v678
          %v732 = vmul.f32 %v620, %v683
          %v733 = vmul.f32 %v621, %v688
          %v734 = vmul.f32 %v622, %v693
          %v735 = vmul.f32 %v623, %v698
          %v736 = vmul.f32 %v624, %v703
          %v737 = vmul.f32 %v625, %v708
          %v738 = vmul.f32 %v626, %v713
          %v739 = vmul.f32 %v627, %v718
          %v740 = vmul.f32 %v628, %v723
          %v741 = vld [vmem:[%s3] sm:$0x1]
          %v743 = vperm.slane %v741, 0
          %v745 = vadd.f32 %v725, %v743
          %v746 = vadd.f32 %v726, %v743
          %v747 = vadd.f32 %v727, %v743
          %v748 = vadd.f32 %v728, %v743
          %v749 = vadd.f32 %v729, %v743
          %v750 = vadd.f32 %v730, %v743
          %v751 = vadd.f32 %v731, %v743
          %v752 = vadd.f32 %v732, %v743
          %v753 = vadd.f32 %v733, %v743
          %v754 = vadd.f32 %v734, %v743
          %v755 = vadd.f32 %v735, %v743
          %v756 = vadd.f32 %v736, %v743
          %v757 = vadd.f32 %v737, %v743
          %v758 = vadd.f32 %v738, %v743
          %v759 = vadd.f32 %v739, %v743
          %v760 = vadd.f32 %v740, %v743
          %761 = vst [vmem:[%s362] sm:$0xff] %v745
          %762 = vst [vmem:[%s362 + $0x8] sm:$0xff] %v746
          %763 = vst [vmem:[%s362 + $0x10] sm:$0xff] %v747
          %764 = vst [vmem:[%s362 + $0x18] sm:$0xff] %v748
          %765 = vst [vmem:[%s362 + $0x20] sm:$0xff] %v749
          %766 = vst [vmem:[%s362 + $0x28] sm:$0xff] %v750
          %767 = vst [vmem:[%s362 + $0x30] sm:$0xff] %v751
          %768 = vst [vmem:[%s362 + $0x38] sm:$0xff] %v752
          %769 = vst [vmem:[%s362 + $0x40] sm:$0xff] %v753
          %770 = vst [vmem:[%s362 + $0x48] sm:$0xff] %v754
          %771 = vst [vmem:[%s362 + $0x50] sm:$0xff] %v755
          %772 = vst [vmem:[%s362 + $0x58] sm:$0xff] %v756
          %773 = vst [vmem:[%s362 + $0x60] sm:$0xff] %v757
          %774 = vst [vmem:[%s362 + $0x68] sm:$0xff] %v758
          %775 = vst [vmem:[%s362 + $0x70] sm:$0xff] %v759
          %776 = vst [vmem:[%s362 + $0x78] sm:$0xff] %v760
        $region85: #{gnn_conv_forward.7} parent=72 // pred_fallthru
          _
        %s777 = smul.u32 16, %s19
        %p778 = scmp.lt.s32.totalorder %s777, 31
        %s779 = scalar_select %p778, %s777, 31
        %s780 = smul.addr %s779, 8
        %s781 = scalar_lea.vmem %s4, %s780
        // Predicated region
        $region86: #{gnn_conv_forward.7} parent=72 // pred_check
          %p782 = pneg %p146
        $region87: #{gnn_conv_forward.7} parent=72 // pred_check_branch
          %784 = sbr.rel (%p782) target = $region89
        $region88: #{gnn_conv_forward.7} parent=72 // pred_region
          %s785 = smul.u32 16, %s19
        $region89: #{gnn_conv_forward.7} parent=72 // pred_fallthru
          _
      $region73: #{gnn_conv_forward.7} parent=5 // pred_fallthru
        _
      %p786 = scmp.le.s32.totalorder 2, %s10
      // Predicated region
      $region90: #{gnn_conv_forward.7} parent=5 // pred_check
        %p787 = pneg %p786
      $region91: #{gnn_conv_forward.7} parent=5 // pred_check_branch
        %789 = sbr.rel (%p787) target = $region93
      $region92: #{gnn_conv_forward.7} parent=5 // pred_region
        %s790 = ssub.s32 %s10, 2
        // Predicated region
        $region94: #{gnn_conv_forward.7} parent=92 // pred_check
          %p791 = pneg %p152
        $region95: #{gnn_conv_forward.7} parent=92 // pred_check_branch
          %793 = sbr.rel (%p791) target = $region97
        $region96: #{gnn_conv_forward.7} parent=92 // pred_region
          %s794 = smul.u32 16, %s21
          %p795 = scmp.lt.s32.totalorder %s794, 31
          %s796 = scalar_select %p795, %s794, 31
          %s797 = smul.addr %s796, 8
          %s798 = scalar_lea.vmem %s4, %s797
        $region97: #{gnn_conv_forward.7} parent=92 // pred_fallthru
          _
      $region93: #{gnn_conv_forward.7} parent=5 // pred_fallthru
        _
    $region6: #{gnn_conv_forward.7} parent=1 // loop_footer
      %s14 = sadd.s32 1, %s10
    $region7: #{gnn_conv_forward.7} parent=1 // loop_footer_branch
      %9 = sbr.rel target = $region3
    $region8: #{gnn_conv_forward.7} parent=1 // loop_exit
      _

</llo_original>
